<compile_context>
chip_gen: v7x
topology: tpu7x:2x2x1
jax: 0.10.0
libtpu: 0.0.40
codegen_flags: <defaults>
</compile_context>

<pallas_src>
import jax
import jax.numpy as jnp
from jax.experimental import pallas as pl
from jax.experimental.pallas import tpu as pltpu


def _round_up(x, m):
    return (x + m - 1) // m * m


def _vmem_limit_bytes():
    kind = ""
    try:
        kind = jax.devices()[0].device_kind.lower()
    except Exception:
        pass
    if "v7" in kind:                     # v7x: 64 MiB VMEM per TensorCore
        return 48 * 1024 * 1024
    return 96 * 1024 * 1024              # v5e / v6e: 128 MiB physical VMEM


def _pick_tiling(N, H, W, Cp, Pp, budget):
    """Largest H tile (divisor of H) that fits the VMEM budget; for small
    spatial stages also block over N so the matmul M dim reaches ~256 rows."""
    def fits(nb, th):
        in_blk = nb * (th + 2) * W * Cp * 2            # bf16 body + halo rows
        out_blk = nb * th * W * Cp * 4                 # f32 output block
        w_bytes = 2 * 2 * (Cp * Pp + 9 * Pp * Pp + Pp * Cp)   # bf16, x2 buffers
        tmp = (nb * (th + 2) * W * Pp * 6              # t1 f32 + bf16
               + nb * (th + 2) * (W + 2) * Pp * 2      # W-padded t1 (bf16)
               + nb * th * W * (9 * Pp * 2             # im2col cat (bf16)
                                + 6 * Pp + 6 * Cp))    # t2 / t3 / out temps
        return 2 * (in_blk + out_blk) + w_bytes + tmp <= budget

    tile_h = 1
    for th in sorted((d for d in range(1, H + 1) if H % d == 0), reverse=True):
        if fits(1, th):
            tile_h = th
            break

    nb = 1
    if tile_h * W < 256:                               # under-filled MXU M dim
        for cand in sorted(d for d in range(1, N + 1) if N % d == 0):
            if cand == 1:
                continue
            if (N // cand) * (H // tile_h) < 2:        # keep >=2 grid steps
                break
            if not fits(cand, tile_h):
                break
            nb = cand
            if nb * tile_h * W >= 256:
                break
    return nb, tile_h


def _bottleneck_kernel(xb_ref, xt_ref, xbo_ref, w1_ref, w2_ref, w3_ref,
                       s1_ref, b1_ref, s2_ref, b2_ref, s3_ref, b3_ref, o_ref):
    nb, TH, W, Cp = xb_ref.shape
    THP2 = TH + 2
    Pp = w1_ref.shape[1]
    f32, bf16 = jnp.float32, jnp.bfloat16

    # ---- assemble (nb, TH+2, W, Cp) bf16 tile: top halo + body + bottom halo -
    x_full = jnp.concatenate([xt_ref[...], xb_ref[...], xbo_ref[...]], axis=1)

    # ---- conv1 (1x1) + BN1 + ReLU (f32 MXU accumulate, f32 epilogue) ---------
    t1 = jnp.dot(x_full.reshape(nb * THP2 * W, Cp), w1_ref[...],
                 preferred_element_type=f32)
    t1 = jnp.maximum(t1 * s1_ref[...] + b1_ref[...], 0.0)
    t1 = t1.reshape(nb, THP2, W, Pp)

    # Zero halo rows that fall outside the image: this IS conv2's H zero
    # padding (padding acts on the post-BN1/ReLU activations).  Only row 0 of
    # the first H-tile and row TH+1 of the last H-tile can be outside.
    i = pl.program_id(1)
    r = jax.lax.broadcasted_iota(jnp.int32, (1, THP2, 1, 1), 1)
    pad_top = jnp.logical_and(r == 0, i == 0)
    pad_bot = jnp.logical_and(r == THP2 - 1, i == pl.num_programs(1) - 1)
    keep = 1.0 - jnp.logical_or(pad_top, pad_bot).astype(f32)
    t1 = (t1 * keep).astype(bf16)           # bf16 BEFORE the im2col copy

    # ---- conv2 (3x3, stride 1, pad 1) as ONE K = 9*Pp matmul -----------------
    t1w = jnp.pad(t1, ((0, 0), (0, 0), (1, 1), (0, 0)))     # W zero-pad only
    taps = []
    for dh in range(3):
        rows = t1w[:, dh:dh + TH]                           # (nb, TH, W+2, Pp)
        for dw in range(3):
            taps.append(rows[:, :, dw:dw + W, :])           # (nb, TH, W, Pp)
    cat = jnp.concatenate(taps, axis=-1).reshape(nb * TH * W, 9 * Pp)
    t2 = jnp.dot(cat, w2_ref[...], preferred_element_type=f32)
    t2 = jnp.maximum(t2 * s2_ref[...] + b2_ref[...], 0.0)

    # ---- conv3 (1x1) + BN3 + residual add + ReLU -----------------------------
    t3 = jnp.dot(t2.astype(bf16), w3_ref[...], preferred_element_type=f32)
    t3 = t3 * s3_ref[...] + b3_ref[...]
    res = xb_ref[...].astype(f32).reshape(nb * TH * W, Cp)  # re-read at use
    o_ref[...] = jnp.maximum(t3 + res, 0.0).reshape(nb, TH, W, Cp)


def bottleneck_pallas(x, w1, w2, w3, s1, b1, s2, b2, s3, b3, *,
                      tile_h=None, nb=None):
    """x: (N, H, W, Cin) f32 NHWC.  w1:(Cin,P), w2:(3,3,P,P) HWIO, w3:(P,4P)."""
    N, H, W, Cin = x.shape
    P = w1.shape[1]
    Cout = w3.shape[1]
    assert Cout == Cin, "identity-shortcut Bottleneck requires inplanes == planes*4"

    LANE = 128
    Cp = _round_up(Cin, LANE)
    Pp = _round_up(P, LANE)

    vmem_cap = _vmem_limit_bytes()
    auto_nb, auto_tile_h = _pick_tiling(N, H, W, Cp, Pp, int(vmem_cap * 0.8))
    if tile_h is None:
        tile_h = auto_tile_h
    if nb is None:
        nb = auto_nb if tile_h == auto_tile_h else 1
    assert H % tile_h == 0, "tile_h must divide H"
    assert N % nb == 0, "nb must divide N"
    TH = tile_h
    nH = H // TH
    nN = N // nb

    f32, bf16 = jnp.float32, jnp.bfloat16

    # ---- fold weights / BN params into lane-dense padded tensors -------------
    w1p = jnp.zeros((Cp, Pp), f32).at[:Cin, :P].set(w1).astype(bf16)
    w2f = (jnp.zeros((3, 3, Pp, Pp), f32).at[:, :, :P, :P].set(w2)
           .reshape(9 * Pp, Pp).astype(bf16))               # (dh, dw, cin) order
    w3p = jnp.zeros((Pp, Cp), f32).at[:P, :Cout].set(w3).astype(bf16)

    def pad_vec(v, n):
        return jnp.zeros((1, n), f32).at[:, :v.shape[-1]].set(v.reshape(1, -1))

    s1p, b1p = pad_vec(s1, Pp), pad_vec(b1, Pp)
    s2p, b2p = pad_vec(s2, Pp), pad_vec(b2, Pp)
    s3p, b3p = pad_vec(s3, Cp), pad_vec(b3, Cp)

    # ---- bf16, channel-padded input (no halo-tile copy in HBM) ---------------
    if Cp == Cin:
        xp = x.astype(bf16)
    else:
        xp = jnp.zeros((N, H, W, Cp), bf16).at[..., :Cin].set(x.astype(bf16))

    body_spec = pl.BlockSpec((nb, TH, W, Cp), lambda n, i: (n, i, 0, 0))
    top_spec = pl.BlockSpec((nb, 1, W, Cp),
                            lambda n, i: (n, jnp.maximum(i * TH - 1, 0), 0, 0))
    bot_spec = pl.BlockSpec((nb, 1, W, Cp),
                            lambda n, i: (n, jnp.minimum(i * TH + TH, H - 1), 0, 0))
    full = lambda a: pl.BlockSpec(a.shape, lambda n, i: (0,) * a.ndim)

    flops = 2 * N * H * W * (Cin * P + 9 * P * P + P * Cout)
    bytes_accessed = int(N * nH * (TH + 2) * W * Cp * 2       # bf16 in (+halo)
                         + N * H * W * Cp * 4                 # f32 out
                         + (w1p.size + w2f.size + w3p.size) * 2)

    out = pl.pallas_call(
        _bottleneck_kernel,
        out_shape=jax.ShapeDtypeStruct((N, H, W, Cp), f32),
        grid_spec=pltpu.PrefetchScalarGridSpec(
            num_scalar_prefetch=0,
            grid=(nN, nH),
            in_specs=[body_spec, top_spec, bot_spec,
                      full(w1p), full(w2f), full(w3p),
                      full(s1p), full(b1p), full(s2p), full(b2p),
                      full(s3p), full(b3p)],
            out_specs=pl.BlockSpec((nb, TH, W, Cp), lambda n, i: (n, i, 0, 0)),
        ),
        compiler_params=pltpu.CompilerParams(
            dimension_semantics=("parallel", "parallel"),
            vmem_limit_bytes=vmem_cap),
        cost_estimate=pl.CostEstimate(flops=flops, transcendentals=0,
                                      bytes_accessed=bytes_accessed),
    )(xp, xp, xp, w1p, w2f, w3p, s1p, b1p, s2p, b2p, s3p, b3p)

    return out[..., :Cout]


def bottleneck_ref(x, w1, w2, w3, s1, b1, s2, b2, s3, b3):
    """Pure-JAX reference (NHWC) with the kernel's precision policy:
    bf16 conv/matmul inputs, f32 accumulation, f32 BN/ReLU/residual."""
    f32, bf16 = jnp.float32, jnp.bfloat16
    xb = x.astype(bf16)
    t = jnp.einsum('nhwc,cp->nhwp', xb, w1.astype(bf16),
                   preferred_element_type=f32)
    t = jnp.maximum(t * s1 + b1, 0.0)
    t = jax.lax.conv_general_dilated(
        t.astype(bf16), w2.astype(bf16), window_strides=(1, 1), padding='SAME',
        dimension_numbers=('NHWC', 'HWIO', 'NHWC'),
        preferred_element_type=f32)
    t = jnp.maximum(t * s2 + b2, 0.0)
    t = jnp.einsum('nhwp,pq->nhwq', t.astype(bf16), w3.astype(bf16),
                   preferred_element_type=f32)
    t = t * s3 + b3
    return jnp.maximum(t + xb.astype(f32), 0.0)


def fold_bn(gamma, beta, mean, var, eps=1e-5):
    scale = gamma / jnp.sqrt(var + eps)
    bias = beta - mean * scale
    return scale[None, :], bias[None, :]     # (1, C) for broadcast


if __name__ == "__main__":
    # Small shapes: inplanes=32, planes=8 (expansion 4 -> out channels 32),
    # stride=1, downsample=None.
    N, H, W = 2, 16, 8
    inplanes, planes = 32, 8

    key = jax.random.PRNGKey(0)
    ks = jax.random.split(key, 8)

    x = jax.random.normal(ks[0], (N, H, W, inplanes), jnp.float32)
    w1 = jax.random.normal(ks[1], (inplanes, planes), jnp.float32) * 0.1        # 1x1
    w2 = jax.random.normal(ks[2], (3, 3, planes, planes), jnp.float32) * 0.1    # 3x3
    w3 = jax.random.normal(ks[3], (planes, planes * 4), jnp.float32) * 0.1      # 1x1

    def bn_params(k, c):
        k1, k2, k3, k4 = jax.random.split(k, 4)
        gamma = 1.0 + 0.1 * jax.random.normal(k1, (c,), jnp.float32)
        beta = 0.1 * jax.random.normal(k2, (c,), jnp.float32)
        mean = 0.1 * jax.random.normal(k3, (c,), jnp.float32)
        var = jnp.abs(jax.random.normal(k4, (c,), jnp.float32)) + 0.5
        return fold_bn(gamma, beta, mean, var)

    s1, b1 = bn_params(ks[4], planes)
    s2, b2 = bn_params(ks[5], planes)
    s3, b3 = bn_params(ks[6], planes * 4)

    ref = bottleneck_ref(x, w1, w2, w3, s1, b1, s2, b2, s3, b3)

    # 1) default heuristic tiling
    out = jax.block_until_ready(
        bottleneck_pallas(x, w1, w2, w3, s1, b1, s2, b2, s3, b3))
    assert out.shape == (N, H, W, planes * 4)
    assert jnp.allclose(out, ref, atol=1e-2, rtol=1e-2), \
        f"default tiling: max abs err {jnp.max(jnp.abs(out - ref))}"

    # 2) multiple H tiles (exercises halo-row DMAs + edge masking)
    out = jax.block_until_ready(
        bottleneck_pallas(x, w1, w2, w3, s1, b1, s2, b2, s3, b3, tile_h=4))
    assert jnp.allclose(out, ref, atol=1e-2, rtol=1e-2), \
        f"tile_h=4: max abs err {jnp.max(jnp.abs(out - ref))}"

    # 3) batch-blocked path for small-spatial stages
    out = jax.block_until_ready(
        bottleneck_pallas(x, w1, w2, w3, s1, b1, s2, b2, s3, b3, tile_h=16, nb=2))
    assert jnp.allclose(out, ref, atol=1e-2, rtol=1e-2), \
        f"nb=2: max abs err {jnp.max(jnp.abs(out - ref))}"

    print("KERNEL_OK")
</pallas_src>

<mosaic_0001>
module attributes {stable_mosaic.version = 11 : i64} {
  func.func @_bottleneck_kernel(%arg0: i32, %arg1: i32, %arg2: memref<1x16x8x128xbf16, #tpu.memory_space<vmem>>, %arg3: memref<1x1x8x128xbf16, #tpu.memory_space<vmem>>, %arg4: memref<1x1x8x128xbf16, #tpu.memory_space<vmem>>, %arg5: memref<128x128xbf16, #tpu.memory_space<vmem>>, %arg6: memref<1152x128xbf16, #tpu.memory_space<vmem>>, %arg7: memref<128x128xbf16, #tpu.memory_space<vmem>>, %arg8: memref<1x128xf32, #tpu.memory_space<vmem>>, %arg9: memref<1x128xf32, #tpu.memory_space<vmem>>, %arg10: memref<1x128xf32, #tpu.memory_space<vmem>>, %arg11: memref<1x128xf32, #tpu.memory_space<vmem>>, %arg12: memref<1x128xf32, #tpu.memory_space<vmem>>, %arg13: memref<1x128xf32, #tpu.memory_space<vmem>>, %arg14: memref<1x16x8x128xf32, #tpu.memory_space<vmem>>) attributes {dimension_semantics = [#tpu.dimension_semantics<parallel>, #tpu.dimension_semantics<parallel>], iteration_bounds = array<i64: 2, 1>, scalar_prefetch = 0 : i64, scratch_operands = 0 : i64, tpu.core_type = #tpu.core_type<tc>, window_params = [{transform_indices = @transform_0, window_bounds = array<i64: 1, 16, 8, 128>}, {transform_indices = @transform_1, window_bounds = array<i64: 1, 1, 8, 128>}, {transform_indices = @transform_2, window_bounds = array<i64: 1, 1, 8, 128>}, {pipeline_mode = #tpu.pipeline_mode<synchronous>, transform_indices = @transform_3, window_bounds = array<i64: 128, 128>}, {pipeline_mode = #tpu.pipeline_mode<synchronous>, transform_indices = @transform_4, window_bounds = array<i64: 1152, 128>}, {pipeline_mode = #tpu.pipeline_mode<synchronous>, transform_indices = @transform_5, window_bounds = array<i64: 128, 128>}, {pipeline_mode = #tpu.pipeline_mode<synchronous>, transform_indices = @transform_6, window_bounds = array<i64: 1, 128>}, {pipeline_mode = #tpu.pipeline_mode<synchronous>, transform_indices = @transform_7, window_bounds = array<i64: 1, 128>}, {pipeline_mode = #tpu.pipeline_mode<synchronous>, transform_indices = @transform_8, window_bounds = array<i64: 1, 128>}, {pipeline_mode = #tpu.pipeline_mode<synchronous>, transform_indices = @transform_9, window_bounds = array<i64: 1, 128>}, {pipeline_mode = #tpu.pipeline_mode<synchronous>, transform_indices = @transform_10, window_bounds = array<i64: 1, 128>}, {pipeline_mode = #tpu.pipeline_mode<synchronous>, transform_indices = @transform_11, window_bounds = array<i64: 1, 128>}, {transform_indices = @transform_12, window_bounds = array<i64: 1, 16, 8, 128>}]} {
    %c0 = arith.constant 0 : index
    %c0_0 = arith.constant 0 : index
    %c0_1 = arith.constant 0 : index
    %c0_2 = arith.constant 0 : index
    %0 = vector.load %arg3[%c0, %c0_0, %c0_1, %c0_2] : memref<1x1x8x128xbf16, #tpu.memory_space<vmem>>, vector<1x1x8x128xbf16>
    %c0_3 = arith.constant 0 : index
    %c0_4 = arith.constant 0 : index
    %c0_5 = arith.constant 0 : index
    %c0_6 = arith.constant 0 : index
    %1 = vector.load %arg2[%c0_3, %c0_4, %c0_5, %c0_6] : memref<1x16x8x128xbf16, #tpu.memory_space<vmem>>, vector<1x16x8x128xbf16>
    %c0_7 = arith.constant 0 : index
    %c0_8 = arith.constant 0 : index
    %c0_9 = arith.constant 0 : index
    %c0_10 = arith.constant 0 : index
    %2 = vector.load %arg4[%c0_7, %c0_8, %c0_9, %c0_10] : memref<1x1x8x128xbf16, #tpu.memory_space<vmem>>, vector<1x1x8x128xbf16>
    %3 = tpu.concatenate %0, %1, %2 in 1 : vector<1x1x8x128xbf16>, vector<1x16x8x128xbf16>, vector<1x1x8x128xbf16> -> vector<1x18x8x128xbf16>
    %4 = vector.shape_cast %3 : vector<1x18x8x128xbf16> to vector<144x128xbf16>
    %c0_11 = arith.constant 0 : index
    %c0_12 = arith.constant 0 : index
    %5 = vector.load %arg5[%c0_11, %c0_12] : memref<128x128xbf16, #tpu.memory_space<vmem>>, vector<128x128xbf16>
    %cst = arith.constant dense<0.000000e+00> : vector<144x128xf32>
    %6 = tpu.matmul %4, %5, %cst {dimension_numbers = #tpu.dot_dimension_numbers<[1], [0], [0], [1], [0, 0, 1, 1], [], []>} : vector<144x128xbf16>, vector<128x128xbf16>, vector<144x128xf32> -> vector<144x128xf32>
    %c0_13 = arith.constant 0 : index
    %c0_14 = arith.constant 0 : index
    %7 = vector.load %arg8[%c0_13, %c0_14] : memref<1x128xf32, #tpu.memory_space<vmem>>, vector<1x128xf32>
    %8 = vector.broadcast %7 : vector<1x128xf32> to vector<144x128xf32>
    %9 = arith.mulf %6, %8 : vector<144x128xf32>
    %c0_15 = arith.constant 0 : index
    %c0_16 = arith.constant 0 : index
    %10 = vector.load %arg9[%c0_15, %c0_16] : memref<1x128xf32, #tpu.memory_space<vmem>>, vector<1x128xf32>
    %11 = vector.broadcast %10 : vector<1x128xf32> to vector<144x128xf32>
    %12 = arith.addf %9, %11 : vector<144x128xf32>
    %cst_17 = arith.constant 0.000000e+00 : f32
    %13 = vector.broadcast %cst_17 : f32 to vector<144x128xf32>
    %14 = arith.maximumf %12, %13 : vector<144x128xf32>
    %15 = vector.shape_cast %14 : vector<144x128xf32> to vector<1x18x8x128xf32>
    %16 = tpu.iota {dimensions = array<i32: 1>} : vector<1x18x1x1xi32>
    %c0_i32 = arith.constant 0 : i32
    %17 = vector.broadcast %c0_i32 : i32 to vector<1x18x1x1xi32>
    %18 = arith.cmpi eq, %16, %17 : vector<1x18x1x1xi32>
    %c0_i32_18 = arith.constant 0 : i32
    %19 = arith.cmpi eq, %arg1, %c0_i32_18 : i32
    %20 = vector.broadcast %19 : i1 to vector<1x18x1x1xi1>
    %21 = arith.andi %18, %20 : vector<1x18x1x1xi1>
    %c17_i32 = arith.constant 17 : i32
    %22 = vector.broadcast %c17_i32 : i32 to vector<1x18x1x1xi32>
    %23 = arith.cmpi eq, %16, %22 : vector<1x18x1x1xi32>
    %c0_i32_19 = arith.constant 0 : i32
    %24 = arith.cmpi eq, %arg1, %c0_i32_19 : i32
    %25 = vector.broadcast %24 : i1 to vector<1x18x1x1xi1>
    %26 = arith.andi %23, %25 : vector<1x18x1x1xi1>
    %27 = arith.ori %21, %26 : vector<1x18x1x1xi1>
    %28 = arith.extui %27 : vector<1x18x1x1xi1> to vector<1x18x1x1xi32>
    %29 = arith.sitofp %28 : vector<1x18x1x1xi32> to vector<1x18x1x1xf32>
    %cst_20 = arith.constant 1.000000e+00 : f32
    %30 = vector.broadcast %cst_20 : f32 to vector<1x18x1x1xf32>
    %31 = arith.subf %30, %29 : vector<1x18x1x1xf32>
    %32 = vector.broadcast %31 : vector<1x18x1x1xf32> to vector<1x18x8x128xf32>
    %33 = arith.mulf %15, %32 : vector<1x18x8x128xf32>
    %34 = arith.truncf %33 : vector<1x18x8x128xf32> to vector<1x18x8x128xbf16>
    %c0_i32_21 = arith.constant 0 : i32
    %35 = arith.sitofp %c0_i32_21 : i32 to bf16
    %36 = vector.broadcast %35 : bf16 to vector<1x18x1x128xbf16>
    %37 = tpu.concatenate %36, %34 in 2 : vector<1x18x1x128xbf16>, vector<1x18x8x128xbf16> -> vector<1x18x9x128xbf16>
    %38 = vector.broadcast %35 : bf16 to vector<1x18x1x128xbf16>
    %39 = tpu.concatenate %37, %38 in 2 : vector<1x18x9x128xbf16>, vector<1x18x1x128xbf16> -> vector<1x18x10x128xbf16>
    %40 = vector.extract_strided_slice %39 {offsets = [0, 0, 0, 0], sizes = [1, 16, 10, 128], strides = [1, 1, 1, 1]} : vector<1x18x10x128xbf16> to vector<1x16x10x128xbf16>
    %41 = vector.extract_strided_slice %40 {offsets = [0, 0, 0, 0], sizes = [1, 16, 8, 128], strides = [1, 1, 1, 1]} : vector<1x16x10x128xbf16> to vector<1x16x8x128xbf16>
    %42 = vector.extract_strided_slice %40 {offsets = [0, 0, 1, 0], sizes = [1, 16, 8, 128], strides = [1, 1, 1, 1]} : vector<1x16x10x128xbf16> to vector<1x16x8x128xbf16>
    %43 = vector.extract_strided_slice %40 {offsets = [0, 0, 2, 0], sizes = [1, 16, 8, 128], strides = [1, 1, 1, 1]} : vector<1x16x10x128xbf16> to vector<1x16x8x128xbf16>
    %44 = vector.extract_strided_slice %39 {offsets = [0, 1, 0, 0], sizes = [1, 16, 10, 128], strides = [1, 1, 1, 1]} : vector<1x18x10x128xbf16> to vector<1x16x10x128xbf16>
    %45 = vector.extract_strided_slice %44 {offsets = [0, 0, 0, 0], sizes = [1, 16, 8, 128], strides = [1, 1, 1, 1]} : vector<1x16x10x128xbf16> to vector<1x16x8x128xbf16>
    %46 = vector.extract_strided_slice %44 {offsets = [0, 0, 1, 0], sizes = [1, 16, 8, 128], strides = [1, 1, 1, 1]} : vector<1x16x10x128xbf16> to vector<1x16x8x128xbf16>
    %47 = vector.extract_strided_slice %44 {offsets = [0, 0, 2, 0], sizes = [1, 16, 8, 128], strides = [1, 1, 1, 1]} : vector<1x16x10x128xbf16> to vector<1x16x8x128xbf16>
    %48 = vector.extract_strided_slice %39 {offsets = [0, 2, 0, 0], sizes = [1, 16, 10, 128], strides = [1, 1, 1, 1]} : vector<1x18x10x128xbf16> to vector<1x16x10x128xbf16>
    %49 = vector.extract_strided_slice %48 {offsets = [0, 0, 0, 0], sizes = [1, 16, 8, 128], strides = [1, 1, 1, 1]} : vector<1x16x10x128xbf16> to vector<1x16x8x128xbf16>
    %50 = vector.extract_strided_slice %48 {offsets = [0, 0, 1, 0], sizes = [1, 16, 8, 128], strides = [1, 1, 1, 1]} : vector<1x16x10x128xbf16> to vector<1x16x8x128xbf16>
    %51 = vector.extract_strided_slice %48 {offsets = [0, 0, 2, 0], sizes = [1, 16, 8, 128], strides = [1, 1, 1, 1]} : vector<1x16x10x128xbf16> to vector<1x16x8x128xbf16>
    %52 = tpu.concatenate %41, %42, %43, %45, %46, %47, %49, %50, %51 in 3 : vector<1x16x8x128xbf16>, vector<1x16x8x128xbf16>, vector<1x16x8x128xbf16>, vector<1x16x8x128xbf16>, vector<1x16x8x128xbf16>, vector<1x16x8x128xbf16>, vector<1x16x8x128xbf16>, vector<1x16x8x128xbf16>, vector<1x16x8x128xbf16> -> vector<1x16x8x1152xbf16>
    %53 = vector.shape_cast %52 : vector<1x16x8x1152xbf16> to vector<128x1152xbf16>
    %c0_22 = arith.constant 0 : index
    %c0_23 = arith.constant 0 : index
    %54 = vector.load %arg6[%c0_22, %c0_23] : memref<1152x128xbf16, #tpu.memory_space<vmem>>, vector<1152x128xbf16>
    %cst_24 = arith.constant dense<0.000000e+00> : vector<128x128xf32>
    %55 = tpu.matmul %53, %54, %cst_24 {dimension_numbers = #tpu.dot_dimension_numbers<[1], [0], [0], [1], [0, 0, 1, 1], [], []>} : vector<128x1152xbf16>, vector<1152x128xbf16>, vector<128x128xf32> -> vector<128x128xf32>
    %c0_25 = arith.constant 0 : index
    %c0_26 = arith.constant 0 : index
    %56 = vector.load %arg10[%c0_25, %c0_26] : memref<1x128xf32, #tpu.memory_space<vmem>>, vector<1x128xf32>
    %57 = vector.broadcast %56 : vector<1x128xf32> to vector<128x128xf32>
    %58 = arith.mulf %55, %57 : vector<128x128xf32>
    %c0_27 = arith.constant 0 : index
    %c0_28 = arith.constant 0 : index
    %59 = vector.load %arg11[%c0_27, %c0_28] : memref<1x128xf32, #tpu.memory_space<vmem>>, vector<1x128xf32>
    %60 = vector.broadcast %59 : vector<1x128xf32> to vector<128x128xf32>
    %61 = arith.addf %58, %60 : vector<128x128xf32>
    %cst_29 = arith.constant 0.000000e+00 : f32
    %62 = vector.broadcast %cst_29 : f32 to vector<128x128xf32>
    %63 = arith.maximumf %61, %62 : vector<128x128xf32>
    %64 = arith.truncf %63 : vector<128x128xf32> to vector<128x128xbf16>
    %c0_30 = arith.constant 0 : index
    %c0_31 = arith.constant 0 : index
    %65 = vector.load %arg7[%c0_30, %c0_31] : memref<128x128xbf16, #tpu.memory_space<vmem>>, vector<128x128xbf16>
    %cst_32 = arith.constant dense<0.000000e+00> : vector<128x128xf32>
    %66 = tpu.matmul %64, %65, %cst_32 {dimension_numbers = #tpu.dot_dimension_numbers<[1], [0], [0], [1], [0, 0, 1, 1], [], []>} : vector<128x128xbf16>, vector<128x128xbf16>, vector<128x128xf32> -> vector<128x128xf32>
    %c0_33 = arith.constant 0 : index
    %c0_34 = arith.constant 0 : index
    %67 = vector.load %arg12[%c0_33, %c0_34] : memref<1x128xf32, #tpu.memory_space<vmem>>, vector<1x128xf32>
    %68 = vector.broadcast %67 : vector<1x128xf32> to vector<128x128xf32>
    %69 = arith.mulf %66, %68 : vector<128x128xf32>
    %c0_35 = arith.constant 0 : index
    %c0_36 = arith.constant 0 : index
    %70 = vector.load %arg13[%c0_35, %c0_36] : memref<1x128xf32, #tpu.memory_space<vmem>>, vector<1x128xf32>
    %71 = vector.broadcast %70 : vector<1x128xf32> to vector<128x128xf32>
    %72 = arith.addf %69, %71 : vector<128x128xf32>
    %c0_37 = arith.constant 0 : index
    %c0_38 = arith.constant 0 : index
    %c0_39 = arith.constant 0 : index
    %c0_40 = arith.constant 0 : index
    %73 = vector.load %arg2[%c0_37, %c0_38, %c0_39, %c0_40] : memref<1x16x8x128xbf16, #tpu.memory_space<vmem>>, vector<1x16x8x128xbf16>
    %74 = arith.extf %73 : vector<1x16x8x128xbf16> to vector<1x16x8x128xf32>
    %75 = vector.shape_cast %74 : vector<1x16x8x128xf32> to vector<128x128xf32>
    %76 = arith.addf %72, %75 : vector<128x128xf32>
    %cst_41 = arith.constant 0.000000e+00 : f32
    %77 = vector.broadcast %cst_41 : f32 to vector<128x128xf32>
    %78 = arith.maximumf %76, %77 : vector<128x128xf32>
    %79 = vector.shape_cast %78 : vector<128x128xf32> to vector<1x16x8x128xf32>
    %c0_42 = arith.constant 0 : index
    %c0_43 = arith.constant 0 : index
    %c0_44 = arith.constant 0 : index
    %c0_45 = arith.constant 0 : index
    %80 = vector.load %arg14[%c0_42, %c0_43, %c0_44, %c0_45] : memref<1x16x8x128xf32, #tpu.memory_space<vmem>>, vector<1x16x8x128xf32>
    tpu.vector_store %arg14[%c0_42, %c0_43, %c0_44, %c0_45], %79 {strides = array<i32>} : memref<1x16x8x128xf32, #tpu.memory_space<vmem>>, vector<1x16x8x128xf32>,
    return
  }
  func.func @transform_0(%arg0: i32, %arg1: i32) -> (i32, i32, i32, i32) {
    %c0_i32 = arith.constant 0 : i32
    %c0_i32_0 = arith.constant 0 : i32
    %c0_i32_1 = arith.constant 0 : i32
    return %arg0, %arg1, %c0_i32, %c0_i32_0 : i32, i32, i32, i32
  }
  func.func @transform_1(%arg0: i32, %arg1: i32) -> (i32, i32, i32, i32) {
    %c16_i32 = arith.constant 16 : i32
    %0 = arith.muli %arg1, %c16_i32 : i32
    %c1_i32 = arith.constant 1 : i32
    %1 = arith.subi %0, %c1_i32 : i32
    %c0_i32 = arith.constant 0 : i32
    %2 = arith.maxsi %1, %c0_i32 : i32
    %c0_i32_0 = arith.constant 0 : i32
    %c0_i32_1 = arith.constant 0 : i32
    %c0_i32_2 = arith.constant 0 : i32
    return %arg0, %2, %c0_i32_0, %c0_i32_1 : i32, i32, i32, i32
  }
  func.func @transform_2(%arg0: i32, %arg1: i32) -> (i32, i32, i32, i32) {
    %c16_i32 = arith.constant 16 : i32
    %0 = arith.muli %arg1, %c16_i32 : i32
    %c16_i32_0 = arith.constant 16 : i32
    %1 = arith.addi %0, %c16_i32_0 : i32
    %c15_i32 = arith.constant 15 : i32
    %2 = arith.minsi %1, %c15_i32 : i32
    %c0_i32 = arith.constant 0 : i32
    %c0_i32_1 = arith.constant 0 : i32
    %c0_i32_2 = arith.constant 0 : i32
    return %arg0, %2, %c0_i32, %c0_i32_1 : i32, i32, i32, i32
  }
  func.func @transform_3(%arg0: i32, %arg1: i32) -> (i32, i32) {
    %c0_i32 = arith.constant 0 : i32
    %c0_i32_0 = arith.constant 0 : i32
    %c0_i32_1 = arith.constant 0 : i32
    return %c0_i32, %c0_i32_0 : i32, i32
  }
  func.func @transform_4(%arg0: i32, %arg1: i32) -> (i32, i32) {
    %c0_i32 = arith.constant 0 : i32
    %c0_i32_0 = arith.constant 0 : i32
    %c0_i32_1 = arith.constant 0 : i32
    return %c0_i32, %c0_i32_0 : i32, i32
  }
  func.func @transform_5(%arg0: i32, %arg1: i32) -> (i32, i32) {
    %c0_i32 = arith.constant 0 : i32
    %c0_i32_0 = arith.constant 0 : i32
    %c0_i32_1 = arith.constant 0 : i32
    return %c0_i32, %c0_i32_0 : i32, i32
  }
  func.func @transform_6(%arg0: i32, %arg1: i32) -> (i32, i32) {
    %c0_i32 = arith.constant 0 : i32
    %c0_i32_0 = arith.constant 0 : i32
    %c0_i32_1 = arith.constant 0 : i32
    return %c0_i32, %c0_i32_0 : i32, i32
  }
  func.func @transform_7(%arg0: i32, %arg1: i32) -> (i32, i32) {
    %c0_i32 = arith.constant 0 : i32
    %c0_i32_0 = arith.constant 0 : i32
    %c0_i32_1 = arith.constant 0 : i32
    return %c0_i32, %c0_i32_0 : i32, i32
  }
  func.func @transform_8(%arg0: i32, %arg1: i32) -> (i32, i32) {
    %c0_i32 = arith.constant 0 : i32
    %c0_i32_0 = arith.constant 0 : i32
    %c0_i32_1 = arith.constant 0 : i32
    return %c0_i32, %c0_i32_0 : i32, i32
  }
  func.func @transform_9(%arg0: i32, %arg1: i32) -> (i32, i32) {
    %c0_i32 = arith.constant 0 : i32
    %c0_i32_0 = arith.constant 0 : i32
    %c0_i32_1 = arith.constant 0 : i32
    return %c0_i32, %c0_i32_0 : i32, i32
  }
  func.func @transform_10(%arg0: i32, %arg1: i32) -> (i32, i32) {
    %c0_i32 = arith.constant 0 : i32
    %c0_i32_0 = arith.constant 0 : i32
    %c0_i32_1 = arith.constant 0 : i32
    return %c0_i32, %c0_i32_0 : i32, i32
  }
  func.func @transform_11(%arg0: i32, %arg1: i32) -> (i32, i32) {
    %c0_i32 = arith.constant 0 : i32
    %c0_i32_0 = arith.constant 0 : i32
    %c0_i32_1 = arith.constant 0 : i32
    return %c0_i32, %c0_i32_0 : i32, i32
  }
  func.func @transform_12(%arg0: i32, %arg1: i32) -> (i32, i32, i32, i32) {
    %c0_i32 = arith.constant 0 : i32
    %c0_i32_0 = arith.constant 0 : i32
    %c0_i32_1 = arith.constant 0 : i32
    return %arg0, %arg1, %c0_i32, %c0_i32_0 : i32, i32, i32, i32
  }
}

</mosaic_0001>

<llo_original>
// kernel: tpu_custom_call.1
$region0: #{tpu_custom_call.1}
  #allocation0 [shape = 'u32[]', space=smem, size = 0x4, offset = 0x4, fixed_abs, tag = 'smem constant byte address 0x4 - core index']
  #allocation1 [shape = 'u32[144,128]{1,0:T(1,128)}', space=vmem, size = 0x12000, scoped, tag = 'internal scratch']
  %s0 = inlined_call_operand.hbm [shape: bf16[2,16,8,128], index: 0, kind: input, shape index: {}]
  %s1 = inlined_call_operand.hbm [shape: bf16[2,16,8,128], index: 1, kind: input, shape index: {}]
  %s2 = inlined_call_operand.hbm [shape: bf16[2,16,8,128], index: 2, kind: input, shape index: {}]
  %s3 = inlined_call_operand.hbm [shape: bf16[128,128], index: 3, kind: input, shape index: {}]
  %s4 = inlined_call_operand.hbm [shape: bf16[1152,128], index: 4, kind: input, shape index: {}]
  %s5 = inlined_call_operand.hbm [shape: bf16[128,128], index: 5, kind: input, shape index: {}]
  %s6 = inlined_call_operand.hbm [shape: f32[1,128], index: 6, kind: input, shape index: {}]
  %s7 = inlined_call_operand.hbm [shape: f32[1,128], index: 7, kind: input, shape index: {}]
  %s8 = inlined_call_operand.hbm [shape: f32[1,128], index: 8, kind: input, shape index: {}]
  %s9 = inlined_call_operand.hbm [shape: f32[1,128], index: 9, kind: input, shape index: {}]
  %s10 = inlined_call_operand.hbm [shape: f32[1,128], index: 10, kind: input, shape index: {}]
  %s11 = inlined_call_operand.hbm [shape: f32[1,128], index: 11, kind: input, shape index: {}]
  %s12 = inlined_call_operand.hbm [shape: f32[2,16,8,128], index: 12, kind: output, shape index: {}]
  %s13 = sld [smem:[#allocation0]]
  $region129: #{tpu_custom_call.1} parent=0
    _
  %s15 = ssub.s32 1, %s13
  %s16 = scalar_select 0, %s15, %s13
  $region1: #{tpu_custom_call.1} parent=0
    #allocation2 [shape = 'u8[65536]{0}', space=vmem, size = 0x10000, scoped, tag = 'input window, operand 0']
    #allocation3 [shape = 's32[2]{0}', space=sflag, size = 0x8, scoped, tag = 'scoped memory for tpu_custom_call.1']
    #allocation4 [shape = 's32[2]{0}', space=sflag, size = 0x8, scoped, tag = 'scoped memory for tpu_custom_call.1']
    #allocation5 [shape = 'u8[4096]{0}', space=vmem, size = 0x1000, scoped, tag = 'input window, operand 1']
    #allocation6 [shape = 's32[2]{0}', space=sflag, size = 0x8, scoped, tag = 'scoped memory for tpu_custom_call.1']
    #allocation7 [shape = 'u8[4096]{0}', space=vmem, size = 0x1000, scoped, tag = 'input window, operand 2']
    #allocation8 [shape = 'u8[32768]{0}', space=vmem, size = 0x8000, scoped, tag = 'input window, operand 3, single buffered']
    #allocation9 [shape = 's32[1]{0}', space=sflag, size = 0x4, scoped, tag = 'scoped memory for tpu_custom_call.1']
    #allocation10 [shape = 'u8[294912]{0}', space=vmem, size = 0x48000, scoped, tag = 'input window, operand 4, single buffered']
    #allocation11 [shape = 'u8[32768]{0}', space=vmem, size = 0x8000, scoped, tag = 'input window, operand 5, single buffered']
    #allocation12 [shape = 's32[1]{0}', space=sflag, size = 0x4, scoped, tag = 'scoped memory for tpu_custom_call.1']
    #allocation13 [shape = 'u8[512]{0}', space=vmem, size = 0x400, scoped, tag = 'input window, operand 6, single buffered']
    #allocation14 [shape = 'u8[512]{0}', space=vmem, size = 0x400, scoped, tag = 'input window, operand 7, single buffered']
    #allocation15 [shape = 's32[1]{0}', space=sflag, size = 0x4, scoped, tag = 'scoped memory for tpu_custom_call.1']
    #allocation16 [shape = 'u8[512]{0}', space=vmem, size = 0x400, scoped, tag = 'input window, operand 8, single buffered']
    #allocation17 [shape = 'u8[512]{0}', space=vmem, size = 0x400, scoped, tag = 'input window, operand 9, single buffered']
    #allocation18 [shape = 's32[1]{0}', space=sflag, size = 0x4, scoped, tag = 'scoped memory for tpu_custom_call.1']
    #allocation19 [shape = 'u8[512]{0}', space=vmem, size = 0x400, scoped, tag = 'input window, operand 10, single buffered']
    #allocation20 [shape = 'u8[512]{0}', space=vmem, size = 0x400, scoped, tag = 'input window, operand 11, single buffered']
    #allocation21 [shape = 's32[1]{0}', space=sflag, size = 0x4, scoped, tag = 'scoped memory for tpu_custom_call.1']
    #allocation22 [shape = 'u8[131072]{0}', space=vmem, size = 0x20000, scoped, tag = 'output window, operand 0']
    %17 = vsyncpa [#allocation3], 0
    %s18 = scalar_lea.sflag [#allocation3], 1
    %19 = vsyncpa %s18, 0
    %20 = vsyncpa [#allocation6], 0
    %s21 = scalar_lea.sflag [#allocation6], 1
    %22 = vsyncpa %s21, 0
    %23 = vsyncpa [#allocation9], 0
    %24 = vsyncpa [#allocation12], 0
    %25 = vsyncpa [#allocation15], 0
    %26 = vsyncpa [#allocation18], 0
    %27 = vsyncpa [#allocation21], 0
    %28 = vsyncpa [#allocation4], 0
    %s29 = scalar_lea.sflag [#allocation4], 1
    %30 = vsyncpa %s29, 0
    loop: start=0, step=1, limit=4
    $region2: #{tpu_custom_call.1} parent=1 // loop_pre_header
      _
    $region3: #{tpu_custom_call.1} parent=1 // loop_header
      %s32 = sphi 0, %s36
      %p33 = scmp.ge.s32.totalorder %s32, 4
      %s39 = sphi 0, %s51
      %s40 = sphi 0, %s47
      %s41 = sphi 0, %s39
      %s42 = sphi 0, %s40
      %s43 = sphi 0, %s41
      %s44 = sphi 0, %s42
      %s56 = sphi 0, %s58
      %s59 = sphi 0, %s56
      %s60 = sphi 0, %s59
      %s76 = sphi 0, %s60
      %s92 = sphi 0, %s94
      %s95 = sphi 0, %s92
      %s96 = sphi 0, %s95
      %s112 = sphi 0, %s96
      %s128 = sphi 0, %s130
      %s131 = sphi 0, %s128
      %s132 = sphi 0, %s131
      %s148 = sphi 0, %s132
      %s152 = sphi 0, %s152
      %s154 = sphi 0, %s152
      %s155 = sphi 0, %s154
      %s169 = sphi 0, %s155
      %s173 = sphi 0, %s173
      %s175 = sphi 0, %s173
      %s176 = sphi 0, %s175
      %s190 = sphi 0, %s176
      %s194 = sphi 0, %s194
      %s196 = sphi 0, %s194
      %s197 = sphi 0, %s196
      %s211 = sphi 0, %s197
      %s215 = sphi 0, %s215
      %s217 = sphi 0, %s215
      %s218 = sphi 0, %s217
      %s232 = sphi 0, %s218
      %s236 = sphi 0, %s236
      %s238 = sphi 0, %s236
      %s239 = sphi 0, %s238
      %s253 = sphi 0, %s239
      %s257 = sphi 0, %s257
      %s259 = sphi 0, %s257
      %s260 = sphi 0, %s259
      %s274 = sphi 0, %s260
      %s278 = sphi 0, %s278
      %s280 = sphi 0, %s278
      %s281 = sphi 0, %s280
      %s295 = sphi 0, %s281
      %s299 = sphi 0, %s299
      %s301 = sphi 0, %s299
      %s302 = sphi 0, %s301
      %s316 = sphi 0, %s302
      %s320 = sphi 0, %s320
      %s322 = sphi 0, %s320
      %s323 = sphi 0, %s322
      %s337 = sphi 0, %s323
      %s345 = sphi 0, %s347
      %s348 = sphi 0, %s345
      %s349 = sphi 0, %s348
      %s365 = sphi 0, %s349
    $region4: #{tpu_custom_call.1} parent=1 // loop_header_branch
      %35 = sbr.rel (%p33) target = $region8
    $region5: #{tpu_custom_call.1} parent=1 // loop_body
      %s37 = ssub.s32 %s32, 1
      %s38 = ssub.s32 %s32, 2
      %s45 = sadd.s32 1, %s40
      %p46 = scmp.ge.s32.totalorder %s45, 1
      %s47 = scalar_select %p46, 0, %s45
      %s48 = sadd.s32 1, %s39
      %s49 = scalar_select %p46, %s48, %s39
      %p50 = scmp.ge.s32.totalorder %s49, 2
      %s51 = scalar_select %p50, 0, %s49
      %s52 = ssub.s32 %s39, %s51
      %s53 = ssub.s32 %s40, %s47
      %s54 = sor.u32 %s52, %s53
      %p55 = scmp.eq.s32.totalorder %s54, 0
      %s57 = sadd.s32 %s56, 1
      %s58 = scalar_select %p55, %s56, %s57
      %p61 = pneg %p55
      %p62 = scmp.eq.s32.totalorder %s32, 1
      %p63 = por %p61, %p62
      %p64 = scmp.ne.s32.totalorder %s56, %s59
      %p65 = scmp.eq.s32.totalorder %s32, 0
      %p66 = por %p64, %p65
      %p67 = scmp.ne.s32.totalorder %s56, %s59
      %p68 = scmp.eq.s32.totalorder %s37, 1
      %p69 = por %p67, %p68
      %p70 = scmp.ne.s32.totalorder %s59, %s60
      %p71 = scmp.eq.s32.totalorder %s37, 0
      %p72 = por %p70, %p71
      %p73 = scmp.ne.s32.totalorder %s59, %s60
      %p74 = scmp.eq.s32.totalorder %s38, 1
      %p75 = por %p73, %p74
      %p77 = scmp.ne.s32.totalorder %s60, %s76
      %p78 = scmp.eq.s32.totalorder %s38, 0
      %p79 = por %p77, %p78
      %s80 = smul.u32 %s40, 16
      %s81 = ssub.s32 %s80, 1
      %p82 = scmp.gt.s32.totalorder %s81, 0
      %s83 = scalar_select %p82, %s81, 0
      %s84 = smul.u32 %s47, 16
      %s85 = ssub.s32 %s84, 1
      %p86 = scmp.gt.s32.totalorder %s85, 0
      %s87 = scalar_select %p86, %s85, 0
      %s88 = ssub.s32 %s39, %s51
      %s89 = ssub.s32 %s83, %s87
      %s90 = sor.u32 %s88, %s89
      %p91 = scmp.eq.s32.totalorder %s90, 0
      %s93 = sadd.s32 %s92, 1
      %s94 = scalar_select %p91, %s92, %s93
      %p97 = pneg %p91
      %p98 = scmp.eq.s32.totalorder %s32, 1
      %p99 = por %p97, %p98
      %p100 = scmp.ne.s32.totalorder %s92, %s95
      %p101 = scmp.eq.s32.totalorder %s32, 0
      %p102 = por %p100, %p101
      %p103 = scmp.ne.s32.totalorder %s92, %s95
      %p104 = scmp.eq.s32.totalorder %s37, 1
      %p105 = por %p103, %p104
      %p106 = scmp.ne.s32.totalorder %s95, %s96
      %p107 = scmp.eq.s32.totalorder %s37, 0
      %p108 = por %p106, %p107
      %p109 = scmp.ne.s32.totalorder %s95, %s96
      %p110 = scmp.eq.s32.totalorder %s38, 1
      %p111 = por %p109, %p110
      %p113 = scmp.ne.s32.totalorder %s96, %s112
      %p114 = scmp.eq.s32.totalorder %s38, 0
      %p115 = por %p113, %p114
      %s116 = smul.u32 %s40, 16
      %s117 = sadd.s32 %s116, 16
      %p118 = scmp.lt.s32.totalorder %s117, 15
      %s119 = scalar_select %p118, %s117, 15
      %s120 = smul.u32 %s47, 16
      %s121 = sadd.s32 %s120, 16
      %p122 = scmp.lt.s32.totalorder %s121, 15
      %s123 = scalar_select %p122, %s121, 15
      %s124 = ssub.s32 %s39, %s51
      %s125 = ssub.s32 %s119, %s123
      %s126 = sor.u32 %s124, %s125
      %p127 = scmp.eq.s32.totalorder %s126, 0
      %s129 = sadd.s32 %s128, 1
      %s130 = scalar_select %p127, %s128, %s129
      %p133 = pneg %p127
      %p134 = scmp.eq.s32.totalorder %s32, 1
      %p135 = por %p133, %p134
      %p136 = scmp.ne.s32.totalorder %s128, %s131
      %p137 = scmp.eq.s32.totalorder %s32, 0
      %p138 = por %p136, %p137
      %p139 = scmp.ne.s32.totalorder %s128, %s131
      %p140 = scmp.eq.s32.totalorder %s37, 1
      %p141 = por %p139, %p140
      %p142 = scmp.ne.s32.totalorder %s131, %s132
      %p143 = scmp.eq.s32.totalorder %s37, 0
      %p144 = por %p142, %p143
      %p145 = scmp.ne.s32.totalorder %s131, %s132
      %p146 = scmp.eq.s32.totalorder %s38, 1
      %p147 = por %p145, %p146
      %p149 = scmp.ne.s32.totalorder %s132, %s148
      %p150 = scmp.eq.s32.totalorder %s38, 0
      %p151 = por %p149, %p150
      %s153 = sadd.s32 %s152, 1
      %p156 = scmp.eq.s32.totalorder %s32, 1
      %p157 = scmp.ne.s32.totalorder %s152, %s154
      %p158 = scmp.eq.s32.totalorder %s32, 0
      %p159 = por %p157, %p158
      %p160 = scmp.ne.s32.totalorder %s152, %s154
      %p161 = scmp.eq.s32.totalorder %s37, 1
      %p162 = por %p160, %p161
      %p163 = scmp.ne.s32.totalorder %s154, %s155
      %p164 = scmp.eq.s32.totalorder %s37, 0
      %p165 = por %p163, %p164
      %p166 = scmp.ne.s32.totalorder %s154, %s155
      %p167 = scmp.eq.s32.totalorder %s38, 1
      %p168 = por %p166, %p167
      %p170 = scmp.ne.s32.totalorder %s155, %s169
      %p171 = scmp.eq.s32.totalorder %s38, 0
      %p172 = por %p170, %p171
      %s174 = sadd.s32 %s173, 1
      %p177 = scmp.eq.s32.totalorder %s32, 1
      %p178 = scmp.ne.s32.totalorder %s173, %s175
      %p179 = scmp.eq.s32.totalorder %s32, 0
      %p180 = por %p178, %p179
      %p181 = scmp.ne.s32.totalorder %s173, %s175
      %p182 = scmp.eq.s32.totalorder %s37, 1
      %p183 = por %p181, %p182
      %p184 = scmp.ne.s32.totalorder %s175, %s176
      %p185 = scmp.eq.s32.totalorder %s37, 0
      %p186 = por %p184, %p185
      %p187 = scmp.ne.s32.totalorder %s175, %s176
      %p188 = scmp.eq.s32.totalorder %s38, 1
      %p189 = por %p187, %p188
      %p191 = scmp.ne.s32.totalorder %s176, %s190
      %p192 = scmp.eq.s32.totalorder %s38, 0
      %p193 = por %p191, %p192
      %s195 = sadd.s32 %s194, 1
      %p198 = scmp.eq.s32.totalorder %s32, 1
      %p199 = scmp.ne.s32.totalorder %s194, %s196
      %p200 = scmp.eq.s32.totalorder %s32, 0
      %p201 = por %p199, %p200
      %p202 = scmp.ne.s32.totalorder %s194, %s196
      %p203 = scmp.eq.s32.totalorder %s37, 1
      %p204 = por %p202, %p203
      %p205 = scmp.ne.s32.totalorder %s196, %s197
      %p206 = scmp.eq.s32.totalorder %s37, 0
      %p207 = por %p205, %p206
      %p208 = scmp.ne.s32.totalorder %s196, %s197
      %p209 = scmp.eq.s32.totalorder %s38, 1
      %p210 = por %p208, %p209
      %p212 = scmp.ne.s32.totalorder %s197, %s211
      %p213 = scmp.eq.s32.totalorder %s38, 0
      %p214 = por %p212, %p213
      %s216 = sadd.s32 %s215, 1
      %p219 = scmp.eq.s32.totalorder %s32, 1
      %p220 = scmp.ne.s32.totalorder %s215, %s217
      %p221 = scmp.eq.s32.totalorder %s32, 0
      %p222 = por %p220, %p221
      %p223 = scmp.ne.s32.totalorder %s215, %s217
      %p224 = scmp.eq.s32.totalorder %s37, 1
      %p225 = por %p223, %p224
      %p226 = scmp.ne.s32.totalorder %s217, %s218
      %p227 = scmp.eq.s32.totalorder %s37, 0
      %p228 = por %p226, %p227
      %p229 = scmp.ne.s32.totalorder %s217, %s218
      %p230 = scmp.eq.s32.totalorder %s38, 1
      %p231 = por %p229, %p230
      %p233 = scmp.ne.s32.totalorder %s218, %s232
      %p234 = scmp.eq.s32.totalorder %s38, 0
      %p235 = por %p233, %p234
      %s237 = sadd.s32 %s236, 1
      %p240 = scmp.eq.s32.totalorder %s32, 1
      %p241 = scmp.ne.s32.totalorder %s236, %s238
      %p242 = scmp.eq.s32.totalorder %s32, 0
      %p243 = por %p241, %p242
      %p244 = scmp.ne.s32.totalorder %s236, %s238
      %p245 = scmp.eq.s32.totalorder %s37, 1
      %p246 = por %p244, %p245
      %p247 = scmp.ne.s32.totalorder %s238, %s239
      %p248 = scmp.eq.s32.totalorder %s37, 0
      %p249 = por %p247, %p248
      %p250 = scmp.ne.s32.totalorder %s238, %s239
      %p251 = scmp.eq.s32.totalorder %s38, 1
      %p252 = por %p250, %p251
      %p254 = scmp.ne.s32.totalorder %s239, %s253
      %p255 = scmp.eq.s32.totalorder %s38, 0
      %p256 = por %p254, %p255
      %s258 = sadd.s32 %s257, 1
      %p261 = scmp.eq.s32.totalorder %s32, 1
      %p262 = scmp.ne.s32.totalorder %s257, %s259
      %p263 = scmp.eq.s32.totalorder %s32, 0
      %p264 = por %p262, %p263
      %p265 = scmp.ne.s32.totalorder %s257, %s259
      %p266 = scmp.eq.s32.totalorder %s37, 1
      %p267 = por %p265, %p266
      %p268 = scmp.ne.s32.totalorder %s259, %s260
      %p269 = scmp.eq.s32.totalorder %s37, 0
      %p270 = por %p268, %p269
      %p271 = scmp.ne.s32.totalorder %s259, %s260
      %p272 = scmp.eq.s32.totalorder %s38, 1
      %p273 = por %p271, %p272
      %p275 = scmp.ne.s32.totalorder %s260, %s274
      %p276 = scmp.eq.s32.totalorder %s38, 0
      %p277 = por %p275, %p276
      %s279 = sadd.s32 %s278, 1
      %p282 = scmp.eq.s32.totalorder %s32, 1
      %p283 = scmp.ne.s32.totalorder %s278, %s280
      %p284 = scmp.eq.s32.totalorder %s32, 0
      %p285 = por %p283, %p284
      %p286 = scmp.ne.s32.totalorder %s278, %s280
      %p287 = scmp.eq.s32.totalorder %s37, 1
      %p288 = por %p286, %p287
      %p289 = scmp.ne.s32.totalorder %s280, %s281
      %p290 = scmp.eq.s32.totalorder %s37, 0
      %p291 = por %p289, %p290
      %p292 = scmp.ne.s32.totalorder %s280, %s281
      %p293 = scmp.eq.s32.totalorder %s38, 1
      %p294 = por %p292, %p293
      %p296 = scmp.ne.s32.totalorder %s281, %s295
      %p297 = scmp.eq.s32.totalorder %s38, 0
      %p298 = por %p296, %p297
      %s300 = sadd.s32 %s299, 1
      %p303 = scmp.eq.s32.totalorder %s32, 1
      %p304 = scmp.ne.s32.totalorder %s299, %s301
      %p305 = scmp.eq.s32.totalorder %s32, 0
      %p306 = por %p304, %p305
      %p307 = scmp.ne.s32.totalorder %s299, %s301
      %p308 = scmp.eq.s32.totalorder %s37, 1
      %p309 = por %p307, %p308
      %p310 = scmp.ne.s32.totalorder %s301, %s302
      %p311 = scmp.eq.s32.totalorder %s37, 0
      %p312 = por %p310, %p311
      %p313 = scmp.ne.s32.totalorder %s301, %s302
      %p314 = scmp.eq.s32.totalorder %s38, 1
      %p315 = por %p313, %p314
      %p317 = scmp.ne.s32.totalorder %s302, %s316
      %p318 = scmp.eq.s32.totalorder %s38, 0
      %p319 = por %p317, %p318
      %s321 = sadd.s32 %s320, 1
      %p324 = scmp.eq.s32.totalorder %s32, 1
      %p325 = scmp.ne.s32.totalorder %s320, %s322
      %p326 = scmp.eq.s32.totalorder %s32, 0
      %p327 = por %p325, %p326
      %p328 = scmp.ne.s32.totalorder %s320, %s322
      %p329 = scmp.eq.s32.totalorder %s37, 1
      %p330 = por %p328, %p329
      %p331 = scmp.ne.s32.totalorder %s322, %s323
      %p332 = scmp.eq.s32.totalorder %s37, 0
      %p333 = por %p331, %p332
      %p334 = scmp.ne.s32.totalorder %s322, %s323
      %p335 = scmp.eq.s32.totalorder %s38, 1
      %p336 = por %p334, %p335
      %p338 = scmp.ne.s32.totalorder %s323, %s337
      %p339 = scmp.eq.s32.totalorder %s38, 0
      %p340 = por %p338, %p339
      %s341 = ssub.s32 %s39, %s51
      %s342 = ssub.s32 %s40, %s47
      %s343 = sor.u32 %s341, %s342
      %p344 = scmp.eq.s32.totalorder %s343, 0
      %s346 = sadd.s32 %s345, 1
      %s347 = scalar_select %p344, %s345, %s346
      %p350 = pneg %p344
      %p351 = scmp.eq.s32.totalorder %s32, 1
      %p352 = por %p350, %p351
      %p353 = scmp.ne.s32.totalorder %s345, %s348
      %p354 = scmp.eq.s32.totalorder %s32, 0
      %p355 = por %p353, %p354
      %p356 = scmp.ne.s32.totalorder %s345, %s348
      %p357 = scmp.eq.s32.totalorder %s37, 1
      %p358 = por %p356, %p357
      %p359 = scmp.ne.s32.totalorder %s348, %s349
      %p360 = scmp.eq.s32.totalorder %s37, 0
      %p361 = por %p359, %p360
      %p362 = scmp.ne.s32.totalorder %s348, %s349
      %p363 = scmp.eq.s32.totalorder %s38, 1
      %p364 = por %p362, %p363
      %p366 = scmp.ne.s32.totalorder %s349, %s365
      %p367 = scmp.eq.s32.totalorder %s38, 0
      %p368 = por %p366, %p367
      %p369 = scmp.le.s32.totalorder 1, %s32
      %p370 = scmp.lt.s32.totalorder %s32, 3
      %p371 = pnand %p369, %p370
      %p372 = pneg %p371
      // Predicated region
      $region9: #{tpu_custom_call.1} parent=5 // pred_check
        _
      $region10: #{tpu_custom_call.1} parent=5 // pred_check_branch
        %374 = sbr.rel (%p371) target = $region12
      $region11: #{tpu_custom_call.1} parent=5 // pred_region
        %s375 = ssub.s32 %s32, 1
        // Predicated region
        $region13: #{tpu_custom_call.1} parent=11 // pred_check
          %p376 = pneg %p165
        $region14: #{tpu_custom_call.1} parent=11 // pred_check_branch
          %378 = sbr.rel (%p376) target = $region16
        $region15: #{tpu_custom_call.1} parent=11 // pred_region
          %s380 = ssub.s32 1024, 1024
          %381 = vsyncadd [#allocation9], %s380
          %s382 = sshll.u32 [#allocation8], 4
          %s383 = int_to_ptr.vmem [resolvable:$true] %s382
          %388 = dma.hbm_to_vmem [thread:$0]  %s3, 1024, %s383, [#allocation9], 64, 64, 4
        $region16: #{tpu_custom_call.1} parent=11 // pred_fallthru
          _
        // Predicated region
        $region17: #{tpu_custom_call.1} parent=11 // pred_check
          %p389 = pneg %p186
        $region18: #{tpu_custom_call.1} parent=11 // pred_check_branch
          %391 = sbr.rel (%p389) target = $region20
        $region19: #{tpu_custom_call.1} parent=11 // pred_region
          %s393 = ssub.s32 9216, 9216
          %394 = vsyncadd [#allocation9], %s393
          %s395 = sshll.u32 [#allocation10], 4
          %s396 = int_to_ptr.vmem [resolvable:$true] %s395
          %401 = dma.hbm_to_vmem [thread:$0]  %s4, 9216, %s396, [#allocation9], 64, 64, 4
        $region20: #{tpu_custom_call.1} parent=11 // pred_fallthru
          _
        // Predicated region
        $region21: #{tpu_custom_call.1} parent=11 // pred_check
          %p402 = pneg %p207
        $region22: #{tpu_custom_call.1} parent=11 // pred_check_branch
          %404 = sbr.rel (%p402) target = $region24
        $region23: #{tpu_custom_call.1} parent=11 // pred_region
          %s406 = ssub.s32 1024, 1024
          %407 = vsyncadd [#allocation12], %s406
          %s408 = sshll.u32 [#allocation11], 4
          %s409 = int_to_ptr.vmem [resolvable:$true] %s408
          %414 = dma.hbm_to_vmem [thread:$0]  %s5, 1024, %s409, [#allocation12], 64, 64, 4
        $region24: #{tpu_custom_call.1} parent=11 // pred_fallthru
          _
        // Predicated region
        $region25: #{tpu_custom_call.1} parent=11 // pred_check
          %p415 = pneg %p228
        $region26: #{tpu_custom_call.1} parent=11 // pred_check_branch
          %417 = sbr.rel (%p415) target = $region28
        $region27: #{tpu_custom_call.1} parent=11 // pred_region
          %s419 = ssub.s32 16, 16
          %420 = vsyncadd [#allocation12], %s419
          %s422 = sshll.u32 [#allocation13], 4
          %s423 = int_to_ptr.vmem [resolvable:$true] %s422
          %425 = dma.hbm_to_vmem [thread:$0]  %s6, 16, %s423, [#allocation12]
        $region28: #{tpu_custom_call.1} parent=11 // pred_fallthru
          _
        // Predicated region
        $region29: #{tpu_custom_call.1} parent=11 // pred_check
          %p426 = pneg %p249
        $region30: #{tpu_custom_call.1} parent=11 // pred_check_branch
          %428 = sbr.rel (%p426) target = $region32
        $region31: #{tpu_custom_call.1} parent=11 // pred_region
          %s430 = ssub.s32 16, 16
          %431 = vsyncadd [#allocation15], %s430
          %s433 = sshll.u32 [#allocation14], 4
          %s434 = int_to_ptr.vmem [resolvable:$true] %s433
          %436 = dma.hbm_to_vmem [thread:$0]  %s7, 16, %s434, [#allocation15]
        $region32: #{tpu_custom_call.1} parent=11 // pred_fallthru
          _
        // Predicated region
        $region33: #{tpu_custom_call.1} parent=11 // pred_check
          %p437 = pneg %p270
        $region34: #{tpu_custom_call.1} parent=11 // pred_check_branch
          %439 = sbr.rel (%p437) target = $region36
        $region35: #{tpu_custom_call.1} parent=11 // pred_region
          %s441 = ssub.s32 16, 16
          %442 = vsyncadd [#allocation15], %s441
          %s444 = sshll.u32 [#allocation16], 4
          %s445 = int_to_ptr.vmem [resolvable:$true] %s444
          %447 = dma.hbm_to_vmem [thread:$0]  %s8, 16, %s445, [#allocation15]
        $region36: #{tpu_custom_call.1} parent=11 // pred_fallthru
          _
        // Predicated region
        $region37: #{tpu_custom_call.1} parent=11 // pred_check
          %p448 = pneg %p291
        $region38: #{tpu_custom_call.1} parent=11 // pred_check_branch
          %450 = sbr.rel (%p448) target = $region40
        $region39: #{tpu_custom_call.1} parent=11 // pred_region
          %s452 = ssub.s32 16, 16
          %453 = vsyncadd [#allocation18], %s452
          %s455 = sshll.u32 [#allocation17], 4
          %s456 = int_to_ptr.vmem [resolvable:$true] %s455
          %458 = dma.hbm_to_vmem [thread:$0]  %s9, 16, %s456, [#allocation18]
        $region40: #{tpu_custom_call.1} parent=11 // pred_fallthru
          _
        // Predicated region
        $region41: #{tpu_custom_call.1} parent=11 // pred_check
          %p459 = pneg %p312
        $region42: #{tpu_custom_call.1} parent=11 // pred_check_branch
          %461 = sbr.rel (%p459) target = $region44
        $region43: #{tpu_custom_call.1} parent=11 // pred_region
          %s463 = ssub.s32 16, 16
          %464 = vsyncadd [#allocation18], %s463
          %s466 = sshll.u32 [#allocation19], 4
          %s467 = int_to_ptr.vmem [resolvable:$true] %s466
          %469 = dma.hbm_to_vmem [thread:$0]  %s10, 16, %s467, [#allocation18]
        $region44: #{tpu_custom_call.1} parent=11 // pred_fallthru
          _
        // Predicated region
        $region45: #{tpu_custom_call.1} parent=11 // pred_check
          %p470 = pneg %p333
        $region46: #{tpu_custom_call.1} parent=11 // pred_check_branch
          %472 = sbr.rel (%p470) target = $region48
        $region47: #{tpu_custom_call.1} parent=11 // pred_region
          %s474 = ssub.s32 16, 16
          %475 = vsyncadd [#allocation21], %s474
          %s477 = sshll.u32 [#allocation20], 4
          %s478 = int_to_ptr.vmem [resolvable:$true] %s477
          %480 = dma.hbm_to_vmem [thread:$0]  %s11, 16, %s478, [#allocation21]
        $region48: #{tpu_custom_call.1} parent=11 // pred_fallthru
          _
      $region12: #{tpu_custom_call.1} parent=5 // pred_fallthru
        _
      %p481 = scmp.lt.s32.totalorder %s32, 2
      // Predicated region
      $region49: #{tpu_custom_call.1} parent=5 // pred_check
        %p482 = pneg %p481
      $region50: #{tpu_custom_call.1} parent=5 // pred_check_branch
        %484 = sbr.rel (%p482) target = $region52
      $region51: #{tpu_custom_call.1} parent=5 // pred_region
        // Predicated region
        $region53: #{tpu_custom_call.1} parent=51 // pred_check
          %p485 = pneg %p66
        $region54: #{tpu_custom_call.1} parent=51 // pred_check_branch
          %487 = sbr.rel (%p485) target = $region56
        $region55: #{tpu_custom_call.1} parent=51 // pred_region
          %s488 = sand.u32 %s56, 1
          %s489 = scalar_lea.sflag [#allocation3], %s488
          %s490 = sand.u32 %s56, 1
          %s491 = smul.addr %s490, 64
          %s492 = scalar_lea.vmem [#allocation2], %s491
          %s493 = smul.u32 16, %s40
          %s495 = ssub.s32 1024, 1024
          %496 = vsyncadd %s489, %s495
          %s497 = smul.addr %s39, 16
          %s498 = sadd.s32 %s493, %s497
          %s499 = smul.addr %s498, 64
          %s500 = scalar_lea.hbm %s0, %s499
          %s501 = sshll.u32 %s492, 4
          %s502 = int_to_ptr.vmem [resolvable:$true] %s501
          %507 = dma.hbm_to_vmem [thread:$0]  %s500, 1024, %s502, %s489, 64, 64, 4
        $region56: #{tpu_custom_call.1} parent=51 // pred_fallthru
          _
        // Predicated region
        $region57: #{tpu_custom_call.1} parent=51 // pred_check
          %p508 = pneg %p102
        $region58: #{tpu_custom_call.1} parent=51 // pred_check_branch
          %510 = sbr.rel (%p508) target = $region60
        $region59: #{tpu_custom_call.1} parent=51 // pred_region
          %s511 = sand.u32 %s32, 1
          %s512 = scalar_lea.sflag [#allocation6], %s511
          %s513 = sand.u32 %s92, 1
          %s514 = smul.addr %s513, 4
          %s515 = scalar_lea.vmem [#allocation5], %s514
          %s516 = smul.u32 %s40, 16
          %s517 = ssub.s32 %s516, 1
          %p518 = scmp.gt.s32.totalorder %s517, 0
          %s519 = scalar_select %p518, %s517, 0
          %s521 = ssub.s32 64, 64
          %522 = vsyncadd %s512, %s521
          %s523 = smul.addr %s39, 16
          %s524 = sadd.s32 %s519, %s523
          %s525 = smul.addr %s524, 64
          %s526 = scalar_lea.hbm %s1, %s525
          %s528 = sshll.u32 %s515, 4
          %s529 = int_to_ptr.vmem [resolvable:$true] %s528
          %531 = dma.hbm_to_vmem [thread:$0]  %s526, 64, %s529, %s512
        $region60: #{tpu_custom_call.1} parent=51 // pred_fallthru
          _
        // Predicated region
        $region61: #{tpu_custom_call.1} parent=51 // pred_check
          %p532 = pneg %p138
        $region62: #{tpu_custom_call.1} parent=51 // pred_check_branch
          %534 = sbr.rel (%p532) target = $region64
        $region63: #{tpu_custom_call.1} parent=51 // pred_region
          %s535 = sand.u32 %s32, 1
          %s536 = scalar_lea.sflag [#allocation6], %s535
          %s537 = sand.u32 %s128, 1
          %s538 = smul.addr %s537, 4
          %s539 = scalar_lea.vmem [#allocation7], %s538
          %s540 = smul.u32 %s40, 16
          %s541 = sadd.s32 %s540, 16
          %p542 = scmp.lt.s32.totalorder %s541, 15
          %s543 = scalar_select %p542, %s541, 15
          %s545 = ssub.s32 64, 64
          %546 = vsyncadd %s536, %s545
          %s547 = smul.addr %s39, 16
          %s548 = sadd.s32 %s543, %s547
          %s549 = smul.addr %s548, 64
          %s550 = scalar_lea.hbm %s2, %s549
          %s552 = sshll.u32 %s539, 4
          %s553 = int_to_ptr.vmem [resolvable:$true] %s552
          %555 = dma.hbm_to_vmem [thread:$0]  %s550, 64, %s553, %s536
        $region64: #{tpu_custom_call.1} parent=51 // pred_fallthru
          _
      $region52: #{tpu_custom_call.1} parent=5 // pred_fallthru
        _
      %p556 = scmp.le.s32.totalorder 1, %s32
      %p557 = scmp.lt.s32.totalorder %s32, 3
      %p558 = pnand %p556, %p557
      %p559 = pneg %p558
      // Predicated region
      $region65: #{tpu_custom_call.1} parent=5 // pred_check
        _
      $region66: #{tpu_custom_call.1} parent=5 // pred_check_branch
        %561 = sbr.rel (%p558) target = $region68
      $region67: #{tpu_custom_call.1} parent=5 // pred_region
        %s562 = ssub.s32 %s32, 1
        %s563 = sand.u32 %s59, 1
        %s564 = scalar_lea.sflag [#allocation3], %s563
        %s565 = sand.u32 %s59, 1
        %s566 = smul.addr %s565, 64
        %s567 = scalar_lea.vmem [#allocation2], %s566
        // Predicated region
        $region69: #{tpu_custom_call.1} parent=67 // pred_check
          %p568 = pneg %p72
        $region70: #{tpu_custom_call.1} parent=67 // pred_check_branch
          %570 = sbr.rel (%p568) target = $region72
        $region71: #{tpu_custom_call.1} parent=67 // pred_region
          %571 = dma.done %s564, 1024
        $region72: #{tpu_custom_call.1} parent=67 // pred_fallthru
          _
        %s572 = sand.u32 %s37, 1
        %s573 = scalar_lea.sflag [#allocation6], %s572
        %s574 = sand.u32 %s95, 1
        %s575 = smul.addr %s574, 4
        %s576 = scalar_lea.vmem [#allocation5], %s575
        // Predicated region
        $region73: #{tpu_custom_call.1} parent=67 // pred_check
          %p577 = pneg %p108
        $region74: #{tpu_custom_call.1} parent=67 // pred_check_branch
          %579 = sbr.rel (%p577) target = $region76
        $region75: #{tpu_custom_call.1} parent=67 // pred_region
          %580 = dma.done %s573, 64
        $region76: #{tpu_custom_call.1} parent=67 // pred_fallthru
          _
        %s581 = sand.u32 %s37, 1
        %s582 = scalar_lea.sflag [#allocation6], %s581
        %s583 = sand.u32 %s131, 1
        %s584 = smul.addr %s583, 4
        %s585 = scalar_lea.vmem [#allocation7], %s584
        // Predicated region
        $region77: #{tpu_custom_call.1} parent=67 // pred_check
          %p586 = pneg %p144
        $region78: #{tpu_custom_call.1} parent=67 // pred_check_branch
          %588 = sbr.rel (%p586) target = $region80
        $region79: #{tpu_custom_call.1} parent=67 // pred_region
          %589 = dma.done %s582, 64
        $region80: #{tpu_custom_call.1} parent=67 // pred_fallthru
          _
        // Predicated region
        $region81: #{tpu_custom_call.1} parent=67 // pred_check
          %p590 = pneg %p165
        $region82: #{tpu_custom_call.1} parent=67 // pred_check_branch
          %592 = sbr.rel (%p590) target = $region84
        $region83: #{tpu_custom_call.1} parent=67 // pred_region
          %593 = dma.done [#allocation9], 1024
        $region84: #{tpu_custom_call.1} parent=67 // pred_fallthru
          _
        // Predicated region
        $region85: #{tpu_custom_call.1} parent=67 // pred_check
          %p594 = pneg %p186
        $region86: #{tpu_custom_call.1} parent=67 // pred_check_branch
          %596 = sbr.rel (%p594) target = $region88
        $region87: #{tpu_custom_call.1} parent=67 // pred_region
          %597 = dma.done [#allocation9], 9216
        $region88: #{tpu_custom_call.1} parent=67 // pred_fallthru
          _
        // Predicated region
        $region89: #{tpu_custom_call.1} parent=67 // pred_check
          %p598 = pneg %p207
        $region90: #{tpu_custom_call.1} parent=67 // pred_check_branch
          %600 = sbr.rel (%p598) target = $region92
        $region91: #{tpu_custom_call.1} parent=67 // pred_region
          %601 = dma.done [#allocation12], 1024
        $region92: #{tpu_custom_call.1} parent=67 // pred_fallthru
          _
        // Predicated region
        $region93: #{tpu_custom_call.1} parent=67 // pred_check
          %p602 = pneg %p228
        $region94: #{tpu_custom_call.1} parent=67 // pred_check_branch
          %604 = sbr.rel (%p602) target = $region96
        $region95: #{tpu_custom_call.1} parent=67 // pred_region
          %605 = dma.done [#allocation12], 16
        $region96: #{tpu_custom_call.1} parent=67 // pred_fallthru
          _
        // Predicated region
        $region97: #{tpu_custom_call.1} parent=67 // pred_check
          %p606 = pneg %p249
        $region98: #{tpu_custom_call.1} parent=67 // pred_check_branch
          %608 = sbr.rel (%p606) target = $region100
        $region99: #{tpu_custom_call.1} parent=67 // pred_region
          %609 = dma.done [#allocation15], 16
        $region100: #{tpu_custom_call.1} parent=67 // pred_fallthru
          _
        // Predicated region
        $region101: #{tpu_custom_call.1} parent=67 // pred_check
          %p610 = pneg %p270
        $region102: #{tpu_custom_call.1} parent=67 // pred_check_branch
          %612 = sbr.rel (%p610) target = $region104
        $region103: #{tpu_custom_call.1} parent=67 // pred_region
          %613 = dma.done [#allocation15], 16
        $region104: #{tpu_custom_call.1} parent=67 // pred_fallthru
          _
        // Predicated region
        $region105: #{tpu_custom_call.1} parent=67 // pred_check
          %p614 = pneg %p291
        $region106: #{tpu_custom_call.1} parent=67 // pred_check_branch
          %616 = sbr.rel (%p614) target = $region108
        $region107: #{tpu_custom_call.1} parent=67 // pred_region
          %617 = dma.done [#allocation18], 16
        $region108: #{tpu_custom_call.1} parent=67 // pred_fallthru
          _
        // Predicated region
        $region109: #{tpu_custom_call.1} parent=67 // pred_check
          %p618 = pneg %p312
        $region110: #{tpu_custom_call.1} parent=67 // pred_check_branch
          %620 = sbr.rel (%p618) target = $region112
        $region111: #{tpu_custom_call.1} parent=67 // pred_region
          %621 = dma.done [#allocation18], 16
        $region112: #{tpu_custom_call.1} parent=67 // pred_fallthru
          _
        // Predicated region
        $region113: #{tpu_custom_call.1} parent=67 // pred_check
          %p622 = pneg %p333
        $region114: #{tpu_custom_call.1} parent=67 // pred_check_branch
          %624 = sbr.rel (%p622) target = $region116
        $region115: #{tpu_custom_call.1} parent=67 // pred_region
          %625 = dma.done [#allocation21], 16
        $region116: #{tpu_custom_call.1} parent=67 // pred_fallthru
          _
        %s626 = sand.u32 %s59, 1
        %s627 = scalar_lea.sflag [#allocation3], %s626
        %s628 = sand.u32 %s59, 1
        %s629 = smul.addr %s628, 64
        %s630 = scalar_lea.vmem [#allocation2], %s629
        %p631 = pneg %p72
        %p632 = pneg %p69
        %s633 = sand.u32 %s37, 1
        %s634 = scalar_lea.sflag [#allocation6], %s633
        %s635 = sand.u32 %s95, 1
        %s636 = smul.addr %s635, 4
        %s637 = scalar_lea.vmem [#allocation5], %s636
        %p638 = pneg %p108
        %p639 = pneg %p105
        %s640 = sand.u32 %s37, 1
        %s641 = scalar_lea.sflag [#allocation6], %s640
        %s642 = sand.u32 %s131, 1
        %s643 = smul.addr %s642, 4
        %s644 = scalar_lea.vmem [#allocation7], %s643
        %p645 = pneg %p144
        %p646 = pneg %p141
        %p647 = pneg %p165
        %p648 = pneg %p162
        %p649 = pneg %p186
        %p650 = pneg %p183
        %p651 = pneg %p207
        %p652 = pneg %p204
        %p653 = pneg %p228
        %p654 = pneg %p225
        %p655 = pneg %p249
        %p656 = pneg %p246
        %p657 = pneg %p270
        %p658 = pneg %p267
        %p659 = pneg %p291
        %p660 = pneg %p288
        %p661 = pneg %p312
        %p662 = pneg %p309
        %p663 = pneg %p333
        %p664 = pneg %p330
        %p665 = pneg %p361
        %p666 = pneg %p358
        %s667 = sand.u32 %s348, 1
        %s668 = scalar_lea.sflag [#allocation4], %s667
        %s669 = sand.u32 %s348, 1
        %s670 = smul.addr %s669, 128
        %s671 = scalar_lea.vmem [#allocation22], %s670
        %s672 = smul.u32 16, %s42
        %s673 = smul.u32 %s42, 16
        %s674 = ssub.s32 %s673, 1
        %p675 = scmp.gt.s32.totalorder %s674, 0
        %s676 = scalar_select %p675, %s674, 0
        %s677 = smul.u32 %s42, 16
        %s678 = sadd.s32 %s677, 16
        %p679 = scmp.lt.s32.totalorder %s678, 15
        %s680 = scalar_select %p679, %s678, 15
        %s681 = smul.u32 16, %s42
        %v683 = vld [vmem:[%s576] sm:$0xf]
        %v684 = vld [vmem:[%s567] sm:$0xf]
        %v685 = vld [vmem:[%s567 + $0x4] sm:$0xf]
        %v686 = vld [vmem:[%s567 + $0x8] sm:$0xf]
        %v687 = vld [vmem:[%s567 + $0xc] sm:$0xf]
        %v688 = vld [vmem:[%s567 + $0x10] sm:$0xf]
        %v689 = vld [vmem:[%s567 + $0x14] sm:$0xf]
        %v690 = vld [vmem:[%s567 + $0x18] sm:$0xf]
        %v691 = vld [vmem:[%s567 + $0x1c] sm:$0xf]
        %v692 = vld [vmem:[%s567 + $0x20] sm:$0xf]
        %v693 = vld [vmem:[%s567 + $0x24] sm:$0xf]
        %v694 = vld [vmem:[%s567 + $0x28] sm:$0xf]
        %v695 = vld [vmem:[%s567 + $0x2c] sm:$0xf]
        %v696 = vld [vmem:[%s567 + $0x30] sm:$0xf]
        %v697 = vld [vmem:[%s567 + $0x34] sm:$0xf]
        %v698 = vld [vmem:[%s567 + $0x38] sm:$0xf]
        %v699 = vld [vmem:[%s567 + $0x3c] sm:$0xf]
        %v700 = vld [vmem:[%s585] sm:$0xf]
        %v701 = vld [vmem:[#allocation8] sm:$0xf]
        %v702 = vld [vmem:[#allocation8 + $0x4] sm:$0xf]
        %v703 = vld [vmem:[#allocation8 + $0x8] sm:$0xf]
        %v704 = vld [vmem:[#allocation8 + $0xc] sm:$0xf]
        %v705 = vld [vmem:[#allocation8 + $0x10] sm:$0xf]
        %v706 = vld [vmem:[#allocation8 + $0x14] sm:$0xf]
        %v707 = vld [vmem:[#allocation8 + $0x18] sm:$0xf]
        %v708 = vld [vmem:[#allocation8 + $0x1c] sm:$0xf]
        %v709 = vld [vmem:[#allocation8 + $0x20] sm:$0xf]
        %v710 = vld [vmem:[#allocation8 + $0x24] sm:$0xf]
        %v711 = vld [vmem:[#allocation8 + $0x28] sm:$0xf]
        %v712 = vld [vmem:[#allocation8 + $0x2c] sm:$0xf]
        %v713 = vld [vmem:[#allocation8 + $0x30] sm:$0xf]
        %v714 = vld [vmem:[#allocation8 + $0x34] sm:$0xf]
        %v715 = vld [vmem:[#allocation8 + $0x38] sm:$0xf]
        %v716 = vld [vmem:[#allocation8 + $0x3c] sm:$0xf]
        %v735 = vunpack.c.l.b16 %v683
        %v736 = vunpack.c.l.b16 %v684
        %v737 = vunpack.c.l.b16 %v685
        %v738 = vunpack.c.l.b16 %v686
        %v739 = vunpack.c.l.b16 %v687
        %v740 = vunpack.c.l.b16 %v688
        %v741 = vunpack.c.l.b16 %v689
        %v742 = vunpack.c.l.b16 %v690
        %v743 = vunpack.c.l.b16 %v691
        %v744 = vunpack.c.l.b16 %v692
        %v745 = vunpack.c.l.b16 %v693
        %v746 = vunpack.c.l.b16 %v694
        %v747 = vunpack.c.l.b16 %v695
        %v748 = vunpack.c.l.b16 %v696
        %v749 = vunpack.c.l.b16 %v697
        %v750 = vunpack.c.l.b16 %v698
        %v751 = vunpack.c.l.b16 %v699
        %v752 = vunpack.c.l.b16 %v700
        %v753 = vpack.c.b16 %v736, %v735
        %v754 = vpack.c.b16 %v738, %v737
        %v755 = vpack.c.b16 %v740, %v739
        %v756 = vpack.c.b16 %v742, %v741
        %v757 = vpack.c.b16 %v744, %v743
        %v758 = vpack.c.b16 %v746, %v745
        %v759 = vpack.c.b16 %v748, %v747
        %v760 = vpack.c.b16 %v750, %v749
        %v761 = vpack.c.b16 %v752, %v751
        %v787 = vunpack.c.l.b16 %v701
        %v788 = vunpack.c.l.b16 %v702
        %v789 = vunpack.c.l.b16 %v703
        %v790 = vunpack.c.l.b16 %v704
        %v791 = vunpack.c.l.b16 %v705
        %v792 = vunpack.c.l.b16 %v706
        %v793 = vunpack.c.l.b16 %v707
        %v794 = vunpack.c.l.b16 %v708
        %v795 = vunpack.c.l.b16 %v709
        %v796 = vunpack.c.l.b16 %v710
        %v797 = vunpack.c.l.b16 %v711
        %v798 = vunpack.c.l.b16 %v712
        %v799 = vunpack.c.l.b16 %v713
        %v800 = vunpack.c.l.b16 %v714
        %v801 = vunpack.c.l.b16 %v715
        %v802 = vunpack.c.l.b16 %v716
        %v803 = vpack.c.b16 %v788, %v787
        %v804 = vpack.c.b16 %v790, %v789
        %v805 = vpack.c.b16 %v792, %v791
        %v806 = vpack.c.b16 %v794, %v793
        %v807 = vpack.c.b16 %v796, %v795
        %v808 = vpack.c.b16 %v798, %v797
        %v809 = vpack.c.b16 %v800, %v799
        %v810 = vpack.c.b16 %v802, %v801
        %819 = vmatprep.subr.bf16.mxu0 0
        %820 = vmatpush1.bf16.msra.mxu0 %v803
        %821 = vmatprep.subr.bf16.mxu0 0
        %822 = vmatpush1.bf16.msra.mxu0 %v804
        %823 = vmatprep.subr.bf16.mxu0 0
        %824 = vmatpush1.bf16.msra.mxu0 %v805
        %825 = vmatprep.subr.bf16.mxu0 0
        %826 = vmatpush1.bf16.msra.mxu0 %v806
        %827 = vmatprep.subr.bf16.mxu0 0
        %828 = vmatpush1.bf16.msra.mxu0 %v807
        %829 = vmatprep.subr.bf16.mxu0 0
        %830 = vmatpush1.bf16.msra.mxu0 %v808
        %831 = vmatprep.subr.bf16.mxu0 0
        %832 = vmatpush1.bf16.msra.mxu0 %v809
        %833 = vmatprep.subr.bf16.mxu0 0
        %834 = vmatpush1.bf16.msra.mxu0 %v810
        %835 = vmatprep.subr.bf16.mxu0 0
        %836 = vmatpush1.bf16.msra.mxu0 0
        %837 = vmatprep.subr.bf16.mxu0 0
        %838 = vmatpush1.bf16.msra.mxu0 0
        %839 = vmatprep.subr.bf16.mxu0 0
        %840 = vmatpush1.bf16.msra.mxu0 0
        %841 = vmatprep.subr.bf16.mxu0 0
        %842 = vmatpush1.bf16.msra.mxu0 0
        %843 = vmatprep.subr.bf16.mxu0 0
        %844 = vmatpush1.bf16.msra.mxu0 0
        %845 = vmatprep.subr.bf16.mxu0 0
        %846 = vmatpush1.bf16.msra.mxu0 0
        %847 = vmatprep.subr.bf16.mxu0 0
        %848 = vmatpush1.bf16.msra.mxu0 0
        %849 = vmatprep.subr.bf16.mxu0 0
        %850 = vmatpush1.bf16.msra.mxu0 0
        %851 = vmatprep.mubr.bf16.mxu0 0
        %852 = vmatmul.mubr.bf16.gmra.mrb[0].mxu0 %v753
        %v853 = vpop.f32.mrb[0].mxu0
        %v854 = vadd.f32 0.0, %v853
        %v855 = vpop.f32.mrb[0].mxu0
        %v856 = vpop.f32.mrb[0].mxu0
        %v857 = vadd.f32 0.0, %v856
        %v858 = vpop.f32.mrb[0].mxu0
        %859 = vmatprep.mubr.bf16.mxu0 0
        %860 = vmatmul.mubr.bf16.gmra.mrb[0].mxu0 %v754
        %v861 = vpop.f32.mrb[0].mxu0
        %v862 = vadd.f32 0.0, %v861
        %v863 = vpop.f32.mrb[0].mxu0
        %v864 = vpop.f32.mrb[0].mxu0
        %v865 = vadd.f32 0.0, %v864
        %v866 = vpop.f32.mrb[0].mxu0
        %867 = vmatprep.mubr.bf16.mxu0 0
        %868 = vmatmul.mubr.bf16.gmra.mrb[0].mxu0 %v755
        %v869 = vpop.f32.mrb[0].mxu0
        %v870 = vadd.f32 0.0, %v869
        %v871 = vpop.f32.mrb[0].mxu0
        %v872 = vpop.f32.mrb[0].mxu0
        %v873 = vadd.f32 0.0, %v872
        %v874 = vpop.f32.mrb[0].mxu0
        %875 = vmatprep.mubr.bf16.mxu0 0
        %876 = vmatmul.mubr.bf16.gmra.mrb[0].mxu0 %v756
        %v877 = vpop.f32.mrb[0].mxu0
        %v878 = vadd.f32 0.0, %v877
        %v879 = vpop.f32.mrb[0].mxu0
        %v880 = vpop.f32.mrb[0].mxu0
        %v881 = vadd.f32 0.0, %v880
        %v882 = vpop.f32.mrb[0].mxu0
        %883 = vmatprep.mubr.bf16.mxu0 0
        %884 = vmatmul.mubr.bf16.gmra.mrb[0].mxu0 %v757
        %v885 = vpop.f32.mrb[0].mxu0
        %v886 = vadd.f32 0.0, %v885
        %v887 = vpop.f32.mrb[0].mxu0
        %v888 = vpop.f32.mrb[0].mxu0
        %v889 = vadd.f32 0.0, %v888
        %v890 = vpop.f32.mrb[0].mxu0
        %891 = vmatprep.mubr.bf16.mxu0 0
        %892 = vmatmul.mubr.bf16.gmra.mrb[0].mxu0 %v758
        %v893 = vpop.f32.mrb[0].mxu0
        %v894 = vadd.f32 0.0, %v893
        %v895 = vpop.f32.mrb[0].mxu0
        %v896 = vpop.f32.mrb[0].mxu0
        %v897 = vadd.f32 0.0, %v896
        %v898 = vpop.f32.mrb[0].mxu0
        %899 = vmatprep.mubr.bf16.mxu0 0
        %900 = vmatmul.mubr.bf16.gmra.mrb[0].mxu0 %v759
        %v901 = vpop.f32.mrb[0].mxu0
        %v902 = vadd.f32 0.0, %v901
        %v903 = vpop.f32.mrb[0].mxu0
        %v904 = vpop.f32.mrb[0].mxu0
        %v905 = vadd.f32 0.0, %v904
        %v906 = vpop.f32.mrb[0].mxu0
        %907 = vmatprep.mubr.bf16.mxu0 0
        %908 = vmatmul.mubr.bf16.gmra.mrb[0].mxu0 %v760
        %v909 = vpop.f32.mrb[0].mxu0
        %v910 = vadd.f32 0.0, %v909
        %v911 = vpop.f32.mrb[0].mxu0
        %v912 = vpop.f32.mrb[0].mxu0
        %v913 = vadd.f32 0.0, %v912
        %v914 = vpop.f32.mrb[0].mxu0
        %915 = vmatprep.mubr.bf16.mxu0 0
        %916 = vmatmul.mubr.bf16.gmra.mrb[0].mxu0 %v761
        %v917 = vpop.f32.mrb[0].mxu0
        %v918 = vadd.f32 0.0, %v917
        %v919 = vpop.f32.mrb[0].mxu0
        %v920 = vpop.f32.mrb[0].mxu0
        %v921 = vadd.f32 0.0, %v920
        %v922 = vpop.f32.mrb[0].mxu0
        %923 = vdwg.mxu0
        %v924 = vld [vmem:[#allocation13] sm:$0x1]
        %v926 = vlaneseq
        %v927 = vshrl.u32 %v926, 7
        %v928 = vsub.s32 0, %v927
        %v929 = vrot.slane %v924, %v928
        %v931 = vmul.f32 %v854, %v929
        %v932 = vmul.f32 %v857, %v929
        %v933 = vmul.f32 %v862, %v929
        %v934 = vmul.f32 %v865, %v929
        %v935 = vmul.f32 %v870, %v929
        %v936 = vmul.f32 %v873, %v929
        %v937 = vmul.f32 %v878, %v929
        %v938 = vmul.f32 %v881, %v929
        %v939 = vmul.f32 %v886, %v929
        %v940 = vmul.f32 %v889, %v929
        %v941 = vmul.f32 %v894, %v929
        %v942 = vmul.f32 %v897, %v929
        %v943 = vmul.f32 %v902, %v929
        %v944 = vmul.f32 %v905, %v929
        %v945 = vmul.f32 %v910, %v929
        %v946 = vmul.f32 %v913, %v929
        %v947 = vmul.f32 %v918, %v929
        %v948 = vmul.f32 %v921, %v929
        %v949 = vld [vmem:[#allocation14] sm:$0x1]
        %v951 = vlaneseq
        %v952 = vshrl.u32 %v951, 7
        %v953 = vsub.s32 0, %v952
        %v954 = vrot.slane %v949, %v953
        %v956 = vadd.f32 %v931, %v954
        %v957 = vadd.f32 %v932, %v954
        %v958 = vadd.f32 %v933, %v954
        %v959 = vadd.f32 %v934, %v954
        %v960 = vadd.f32 %v935, %v954
        %v961 = vadd.f32 %v936, %v954
        %v962 = vadd.f32 %v937, %v954
        %v963 = vadd.f32 %v938, %v954
        %v964 = vadd.f32 %v939, %v954
        %v965 = vadd.f32 %v940, %v954
        %v966 = vadd.f32 %v941, %v954
        %v967 = vadd.f32 %v942, %v954
        %v968 = vadd.f32 %v943, %v954
        %v969 = vadd.f32 %v944, %v954
        %v970 = vadd.f32 %v945, %v954
        %v971 = vadd.f32 %v946, %v954
        %v972 = vadd.f32 %v947, %v954
        %v973 = vadd.f32 %v948, %v954
        %v974 = vmax.f32 %v956, 0.0
        %v975 = vmax.f32 %v957, 0.0
        %v976 = vmax.f32 %v958, 0.0
        %v977 = vmax.f32 %v959, 0.0
        %v978 = vmax.f32 %v960, 0.0
        %v979 = vmax.f32 %v961, 0.0
        %v980 = vmax.f32 %v962, 0.0
        %v981 = vmax.f32 %v963, 0.0
        %v982 = vmax.f32 %v964, 0.0
        %v983 = vmax.f32 %v965, 0.0
        %v984 = vmax.f32 %v966, 0.0
        %v985 = vmax.f32 %v967, 0.0
        %v986 = vmax.f32 %v968, 0.0
        %v987 = vmax.f32 %v969, 0.0
        %v988 = vmax.f32 %v970, 0.0
        %v989 = vmax.f32 %v971, 0.0
        %v990 = vmax.f32 %v972, 0.0
        %v991 = vmax.f32 %v973, 0.0
        %p992 = scmp.eq.s32.totalorder %s42, 0
        %s993 = scalar_select %p992, 1, 0
        %v994 = vstv %s993
        %vm995 = vcmp.eq.s32.totalorder %v994, 1
        %v996 = vsel %vm995, 1, 0
        %v997 = vcvt.s32.f32 %v996
        %v998 = vcvt.s32.f32 0
        %v999 = vsub.f32 1.0, %v997
        %v1000 = vsub.f32 1.0, %v998
        %v1001 = vmul.f32 %v974, %v999
        %v1002 = vmul.f32 %v975, %v1000
        %v1003 = vmul.f32 %v976, %v1000
        %v1004 = vmul.f32 %v977, %v1000
        %v1005 = vmul.f32 %v978, %v1000
        %v1006 = vmul.f32 %v979, %v1000
        %v1007 = vmul.f32 %v980, %v1000
        %v1008 = vmul.f32 %v981, %v1000
        %v1009 = vmul.f32 %v982, %v1000
        %v1010 = vmul.f32 %v983, %v1000
        %v1011 = vmul.f32 %v984, %v1000
        %v1012 = vmul.f32 %v985, %v1000
        %v1013 = vmul.f32 %v986, %v1000
        %v1014 = vmul.f32 %v987, %v1000
        %v1015 = vmul.f32 %v988, %v1000
        %v1016 = vmul.f32 %v989, %v1000
        %v1017 = vmul.f32 %v990, %v1000
        %v1018 = vmul.f32 %v991, %v999
        %v1019 = vpack.c.bf16 %v1001, %v1001
        %v1020 = vpack.c.bf16 %v1002, %v1002
        %v1021 = vpack.c.bf16 %v1003, %v1003
        %v1022 = vpack.c.bf16 %v1004, %v1004
        %v1023 = vpack.c.bf16 %v1005, %v1005
        %v1024 = vpack.c.bf16 %v1006, %v1006
        %v1025 = vpack.c.bf16 %v1007, %v1007
        %v1026 = vpack.c.bf16 %v1008, %v1008
        %v1027 = vpack.c.bf16 %v1009, %v1009
        %v1028 = vpack.c.bf16 %v1010, %v1010
        %v1029 = vpack.c.bf16 %v1011, %v1011
        %v1030 = vpack.c.bf16 %v1012, %v1012
        %v1031 = vpack.c.bf16 %v1013, %v1013
        %v1032 = vpack.c.bf16 %v1014, %v1014
        %v1033 = vpack.c.bf16 %v1015, %v1015
        %v1034 = vpack.c.bf16 %v1016, %v1016
        %v1035 = vpack.c.bf16 %v1017, %v1017
        %v1036 = vpack.c.bf16 %v1018, %v1018
        %v1038 = vshrl.u32 %v1019, 16
        %v1040 = vrot.slane %v1038, 7
        %v1041 = vshll.u32 %v1019, 16
        %v1043 = vor.u32 %v1040, %v1041
        %v1045 = vshrl.u32 %v1020, 16
        %v1047 = vrot.slane %v1045, 7
        %v1048 = vshll.u32 %v1020, 16
        %v1050 = vor.u32 %v1047, %v1048
        %v1052 = vshrl.u32 %v1021, 16
        %v1054 = vrot.slane %v1052, 7
        %v1055 = vshll.u32 %v1021, 16
        %v1057 = vor.u32 %v1054, %v1055
        %v1059 = vshrl.u32 %v1022, 16
        %v1061 = vrot.slane %v1059, 7
        %v1062 = vshll.u32 %v1022, 16
        %v1064 = vor.u32 %v1061, %v1062
        %v1066 = vshrl.u32 %v1023, 16
        %v1068 = vrot.slane %v1066, 7
        %v1069 = vshll.u32 %v1023, 16
        %v1071 = vor.u32 %v1068, %v1069
        %v1073 = vshrl.u32 %v1024, 16
        %v1075 = vrot.slane %v1073, 7
        %v1076 = vshll.u32 %v1024, 16
        %v1078 = vor.u32 %v1075, %v1076
        %v1080 = vshrl.u32 %v1025, 16
        %v1082 = vrot.slane %v1080, 7
        %v1083 = vshll.u32 %v1025, 16
        %v1085 = vor.u32 %v1082, %v1083
        %v1087 = vshrl.u32 %v1026, 16
        %v1089 = vrot.slane %v1087, 7
        %v1090 = vshll.u32 %v1026, 16
        %v1092 = vor.u32 %v1089, %v1090
        %v1094 = vshrl.u32 %v1027, 16
        %v1096 = vrot.slane %v1094, 7
        %v1097 = vshll.u32 %v1027, 16
        %v1099 = vor.u32 %v1096, %v1097
        %v1101 = vshrl.u32 %v1028, 16
        %v1103 = vrot.slane %v1101, 7
        %v1104 = vshll.u32 %v1028, 16
        %v1106 = vor.u32 %v1103, %v1104
        %v1108 = vshrl.u32 %v1029, 16
        %v1110 = vrot.slane %v1108, 7
        %v1111 = vshll.u32 %v1029, 16
        %v1113 = vor.u32 %v1110, %v1111
        %v1115 = vshrl.u32 %v1030, 16
        %v1117 = vrot.slane %v1115, 7
        %v1118 = vshll.u32 %v1030, 16
        %v1120 = vor.u32 %v1117, %v1118
        %v1122 = vshrl.u32 %v1031, 16
        %v1124 = vrot.slane %v1122, 7
        %v1125 = vshll.u32 %v1031, 16
        %v1127 = vor.u32 %v1124, %v1125
        %v1129 = vshrl.u32 %v1032, 16
        %v1131 = vrot.slane %v1129, 7
        %v1132 = vshll.u32 %v1032, 16
        %v1134 = vor.u32 %v1131, %v1132
        %v1136 = vshrl.u32 %v1033, 16
        %v1138 = vrot.slane %v1136, 7
        %v1139 = vshll.u32 %v1033, 16
        %v1141 = vor.u32 %v1138, %v1139
        %v1143 = vshrl.u32 %v1034, 16
        %v1145 = vrot.slane %v1143, 7
        %v1146 = vshll.u32 %v1034, 16
        %v1148 = vor.u32 %v1145, %v1146
        %v1150 = vshrl.u32 %v1035, 16
        %v1152 = vrot.slane %v1150, 7
        %v1153 = vshll.u32 %v1035, 16
        %v1155 = vor.u32 %v1152, %v1153
        %v1157 = vshrl.u32 %v1036, 16
        %v1159 = vrot.slane %v1157, 7
        %v1160 = vshll.u32 %v1036, 16
        %v1162 = vor.u32 %v1159, %v1160
        %vm1181 = vcmask 1040384
        %vm1182 = vsmask.f32 256
        %vm1183 = vmand %vm1181, %vm1182
        %v1184 = vsel %vm1183, 0, %v1043
        %v1185 = vsel %vm1183, 0, %v1050
        %v1186 = vsel %vm1183, 0, %v1057
        %v1187 = vsel %vm1183, 0, %v1064
        %v1188 = vsel %vm1183, 0, %v1071
        %v1189 = vsel %vm1183, 0, %v1078
        %v1190 = vsel %vm1183, 0, %v1085
        %v1191 = vsel %vm1183, 0, %v1092
        %v1192 = vsel %vm1183, 0, %v1099
        %v1193 = vsel %vm1183, 0, %v1106
        %v1194 = vsel %vm1183, 0, %v1113
        %v1195 = vsel %vm1183, 0, %v1120
        %v1196 = vsel %vm1183, 0, %v1127
        %v1197 = vsel %vm1183, 0, %v1134
        %v1198 = vsel %vm1183, 0, %v1141
        %v1199 = vsel %vm1183, 0, %v1148
        %v1200 = vsel %vm1183, 0, %v1155
        %v1201 = vsel %vm1183, 0, %v1162
        %vm1202 = vcmask 1044480
        %vm1203 = vsmask.f32 4352
        %vm1204 = vmand %vm1202, %vm1203
        %v1205 = vsel %vm1204, %v1184, 0
        %v1206 = vsel %vm1204, %v1185, 0
        %v1207 = vsel %vm1204, %v1186, 0
        %v1208 = vsel %vm1204, %v1187, 0
        %v1209 = vsel %vm1204, %v1188, 0
        %v1210 = vsel %vm1204, %v1189, 0
        %v1211 = vsel %vm1204, %v1190, 0
        %v1212 = vsel %vm1204, %v1191, 0
        %v1213 = vsel %vm1204, %v1192, 0
        %v1214 = vsel %vm1204, %v1193, 0
        %v1215 = vsel %vm1204, %v1194, 0
        %v1216 = vsel %vm1204, %v1195, 0
        %v1217 = vsel %vm1204, %v1196, 0
        %v1218 = vsel %vm1204, %v1197, 0
        %v1219 = vsel %vm1204, %v1198, 0
        %v1220 = vsel %vm1204, %v1199, 0
        %v1221 = vsel %vm1204, %v1200, 0
        %v1222 = vsel %vm1204, %v1201, 0
        %v1224 = vshrl.u32 %v1205, 16
        %v1226 = vshll.u32 %v1205, 16
        %v1228 = vrot.slane %v1226, 1
        %v1229 = vor.u32 %v1224, %v1228
        %v1231 = vshrl.u32 %v1206, 16
        %v1233 = vshll.u32 %v1206, 16
        %v1235 = vrot.slane %v1233, 1
        %v1236 = vor.u32 %v1231, %v1235
        %v1238 = vshrl.u32 %v1207, 16
        %v1240 = vshll.u32 %v1207, 16
        %v1242 = vrot.slane %v1240, 1
        %v1243 = vor.u32 %v1238, %v1242
        %v1245 = vshrl.u32 %v1208, 16
        %v1247 = vshll.u32 %v1208, 16
        %v1249 = vrot.slane %v1247, 1
        %v1250 = vor.u32 %v1245, %v1249
        %v1252 = vshrl.u32 %v1209, 16
        %v1254 = vshll.u32 %v1209, 16
        %v1256 = vrot.slane %v1254, 1
        %v1257 = vor.u32 %v1252, %v1256
        %v1259 = vshrl.u32 %v1210, 16
        %v1261 = vshll.u32 %v1210, 16
        %v1263 = vrot.slane %v1261, 1
        %v1264 = vor.u32 %v1259, %v1263
        %v1266 = vshrl.u32 %v1211, 16
        %v1268 = vshll.u32 %v1211, 16
        %v1270 = vrot.slane %v1268, 1
        %v1271 = vor.u32 %v1266, %v1270
        %v1273 = vshrl.u32 %v1212, 16
        %v1275 = vshll.u32 %v1212, 16
        %v1277 = vrot.slane %v1275, 1
        %v1278 = vor.u32 %v1273, %v1277
        %v1280 = vshrl.u32 %v1213, 16
        %v1282 = vshll.u32 %v1213, 16
        %v1284 = vrot.slane %v1282, 1
        %v1285 = vor.u32 %v1280, %v1284
        %v1287 = vshrl.u32 %v1214, 16
        %v1289 = vshll.u32 %v1214, 16
        %v1291 = vrot.slane %v1289, 1
        %v1292 = vor.u32 %v1287, %v1291
        %v1294 = vshrl.u32 %v1215, 16
        %v1296 = vshll.u32 %v1215, 16
        %v1298 = vrot.slane %v1296, 1
        %v1299 = vor.u32 %v1294, %v1298
        %v1301 = vshrl.u32 %v1216, 16
        %v1303 = vshll.u32 %v1216, 16
        %v1305 = vrot.slane %v1303, 1
        %v1306 = vor.u32 %v1301, %v1305
        %v1308 = vshrl.u32 %v1217, 16
        %v1310 = vshll.u32 %v1217, 16
        %v1312 = vrot.slane %v1310, 1
        %v1313 = vor.u32 %v1308, %v1312
        %v1315 = vshrl.u32 %v1218, 16
        %v1317 = vshll.u32 %v1218, 16
        %v1319 = vrot.slane %v1317, 1
        %v1320 = vor.u32 %v1315, %v1319
        %v1322 = vshrl.u32 %v1219, 16
        %v1324 = vshll.u32 %v1219, 16
        %v1326 = vrot.slane %v1324, 1
        %v1327 = vor.u32 %v1322, %v1326
        %v1329 = vshrl.u32 %v1220, 16
        %v1331 = vshll.u32 %v1220, 16
        %v1333 = vrot.slane %v1331, 1
        %v1334 = vor.u32 %v1329, %v1333
        %v1351 = vrot.slane %v1205, 1
        %v1352 = vrot.slane %v1206, 1
        %v1353 = vrot.slane %v1207, 1
        %v1354 = vrot.slane %v1208, 1
        %v1355 = vrot.slane %v1209, 1
        %v1356 = vrot.slane %v1210, 1
        %v1357 = vrot.slane %v1211, 1
        %v1358 = vrot.slane %v1212, 1
        %v1359 = vrot.slane %v1213, 1
        %v1360 = vrot.slane %v1214, 1
        %v1361 = vrot.slane %v1215, 1
        %v1362 = vrot.slane %v1216, 1
        %v1363 = vrot.slane %v1217, 1
        %v1364 = vrot.slane %v1218, 1
        %v1365 = vrot.slane %v1219, 1
        %v1366 = vrot.slane %v1220, 1
        %v1368 = vshrl.u32 %v1221, 16
        %v1370 = vshll.u32 %v1221, 16
        %v1372 = vrot.slane %v1370, 1
        %v1373 = vor.u32 %v1368, %v1372
        %v1375 = vrot.slane %v1221, 1
        %v1377 = vshrl.u32 %v1222, 16
        %v1379 = vshll.u32 %v1222, 16
        %v1381 = vrot.slane %v1379, 1
        %v1382 = vor.u32 %v1377, %v1381
        %v1384 = vrot.slane %v1222, 1
        %v1385 = vunpack.c.l.b16 %v1205
        %v1386 = vunpack.c.l.b16 %v1229
        %v1387 = vunpack.c.l.b16 %v1351
        %v1388 = vunpack.c.l.b16 %v1206
        %v1389 = vunpack.c.l.b16 %v1236
        %v1390 = vunpack.c.l.b16 %v1352
        %v1391 = vunpack.c.l.b16 %v1207
        %v1392 = vunpack.c.l.b16 %v1243
        %v1393 = vunpack.c.l.b16 %v1353
        %v1394 = vunpack.c.l.b16 %v1208
        %v1395 = vunpack.c.l.b16 %v1250
        %v1396 = vunpack.c.l.b16 %v1354
        %v1397 = vunpack.c.l.b16 %v1209
        %v1398 = vunpack.c.l.b16 %v1257
        %v1399 = vunpack.c.l.b16 %v1355
        %v1400 = vunpack.c.l.b16 %v1210
        %v1401 = vunpack.c.l.b16 %v1264
        %v1402 = vunpack.c.l.b16 %v1356
        %v1403 = vunpack.c.l.b16 %v1211
        %v1404 = vunpack.c.l.b16 %v1271
        %v1405 = vunpack.c.l.b16 %v1357
        %v1406 = vunpack.c.l.b16 %v1212
        %v1407 = vunpack.c.l.b16 %v1278
        %v1408 = vunpack.c.l.b16 %v1358
        %v1409 = vunpack.c.l.b16 %v1213
        %v1410 = vunpack.c.l.b16 %v1285
        %v1411 = vunpack.c.l.b16 %v1359
        %v1412 = vunpack.c.l.b16 %v1214
        %v1413 = vunpack.c.l.b16 %v1292
        %v1414 = vunpack.c.l.b16 %v1360
        %v1415 = vunpack.c.l.b16 %v1215
        %v1416 = vunpack.c.l.b16 %v1299
        %v1417 = vunpack.c.l.b16 %v1361
        %v1418 = vunpack.c.l.b16 %v1216
        %v1419 = vunpack.c.l.b16 %v1306
        %v1420 = vunpack.c.l.b16 %v1362
        %v1421 = vunpack.c.l.b16 %v1217
        %v1422 = vunpack.c.l.b16 %v1313
        %v1423 = vunpack.c.l.b16 %v1363
        %v1424 = vunpack.c.l.b16 %v1218
        %v1425 = vunpack.c.l.b16 %v1320
        %v1426 = vunpack.c.l.b16 %v1364
        %v1427 = vunpack.c.l.b16 %v1219
        %v1428 = vunpack.c.l.b16 %v1327
        %v1429 = vunpack.c.l.b16 %v1365
        %v1430 = vunpack.c.l.b16 %v1220
        %v1431 = vunpack.c.l.b16 %v1334
        %v1432 = vunpack.c.l.b16 %v1366
        %v1433 = vunpack.c.l.b16 %v1221
        %v1434 = vunpack.c.l.b16 %v1373
        %v1435 = vunpack.c.l.b16 %v1375
        %v1436 = vunpack.c.l.b16 %v1222
        %v1437 = vunpack.c.l.b16 %v1382
        %v1438 = vunpack.c.l.b16 %v1384
        %v1439 = vld [vmem:[#allocation10] sm:$0xf]
        %v1440 = vld [vmem:[#allocation10 + $0x4] sm:$0xf]
        %v1441 = vld [vmem:[#allocation10 + $0x8] sm:$0xf]
        %v1442 = vld [vmem:[#allocation10 + $0xc] sm:$0xf]
        %v1443 = vld [vmem:[#allocation10 + $0x10] sm:$0xf]
        %v1444 = vld [vmem:[#allocation10 + $0x14] sm:$0xf]
        %v1445 = vld [vmem:[#allocation10 + $0x18] sm:$0xf]
        %v1446 = vld [vmem:[#allocation10 + $0x1c] sm:$0xf]
        %v1447 = vld [vmem:[#allocation10 + $0x20] sm:$0xf]
        %v1448 = vld [vmem:[#allocation10 + $0x24] sm:$0xf]
        %v1449 = vld [vmem:[#allocation10 + $0x28] sm:$0xf]
        %v1450 = vld [vmem:[#allocation10 + $0x2c] sm:$0xf]
        %v1451 = vld [vmem:[#allocation10 + $0x30] sm:$0xf]
        %v1452 = vld [vmem:[#allocation10 + $0x34] sm:$0xf]
        %v1453 = vld [vmem:[#allocation10 + $0x38] sm:$0xf]
        %v1454 = vld [vmem:[#allocation10 + $0x3c] sm:$0xf]
        %v1455 = vld [vmem:[#allocation10 + $0x40] sm:$0xf]
        %v1456 = vld [vmem:[#allocation10 + $0x44] sm:$0xf]
        %v1457 = vld [vmem:[#allocation10 + $0x48] sm:$0xf]
        %v1458 = vld [vmem:[#allocation10 + $0x4c] sm:$0xf]
        %v1459 = vld [vmem:[#allocation10 + $0x50] sm:$0xf]
        %v1460 = vld [vmem:[#allocation10 + $0x54] sm:$0xf]
        %v1461 = vld [vmem:[#allocation10 + $0x58] sm:$0xf]
        %v1462 = vld [vmem:[#allocation10 + $0x5c] sm:$0xf]
        %v1463 = vld [vmem:[#allocation10 + $0x60] sm:$0xf]
        %v1464 = vld [vmem:[#allocation10 + $0x64] sm:$0xf]
        %v1465 = vld [vmem:[#allocation10 + $0x68] sm:$0xf]
        %v1466 = vld [vmem:[#allocation10 + $0x6c] sm:$0xf]
        %v1467 = vld [vmem:[#allocation10 + $0x70] sm:$0xf]
        %v1468 = vld [vmem:[#allocation10 + $0x74] sm:$0xf]
        %v1469 = vld [vmem:[#allocation10 + $0x78] sm:$0xf]
        %v1470 = vld [vmem:[#allocation10 + $0x7c] sm:$0xf]
        %v1471 = vld [vmem:[#allocation10 + $0x80] sm:$0xf]
        %v1472 = vld [vmem:[#allocation10 + $0x84] sm:$0xf]
        %v1473 = vld [vmem:[#allocation10 + $0x88] sm:$0xf]
        %v1474 = vld [vmem:[#allocation10 + $0x8c] sm:$0xf]
        %v1475 = vld [vmem:[#allocation10 + $0x90] sm:$0xf]
        %v1476 = vld [vmem:[#allocation10 + $0x94] sm:$0xf]
        %v1477 = vld [vmem:[#allocation10 + $0x98] sm:$0xf]
        %v1478 = vld [vmem:[#allocation10 + $0x9c] sm:$0xf]
        %v1479 = vld [vmem:[#allocation10 + $0xa0] sm:$0xf]
        %v1480 = vld [vmem:[#allocation10 + $0xa4] sm:$0xf]
        %v1481 = vld [vmem:[#allocation10 + $0xa8] sm:$0xf]
        %v1482 = vld [vmem:[#allocation10 + $0xac] sm:$0xf]
        %v1483 = vld [vmem:[#allocation10 + $0xb0] sm:$0xf]
        %v1484 = vld [vmem:[#allocation10 + $0xb4] sm:$0xf]
        %v1485 = vld [vmem:[#allocation10 + $0xb8] sm:$0xf]
        %v1486 = vld [vmem:[#allocation10 + $0xbc] sm:$0xf]
        %v1487 = vld [vmem:[#allocation10 + $0xc0] sm:$0xf]
        %v1488 = vld [vmem:[#allocation10 + $0xc4] sm:$0xf]
        %v1489 = vld [vmem:[#allocation10 + $0xc8] sm:$0xf]
        %v1490 = vld [vmem:[#allocation10 + $0xcc] sm:$0xf]
        %v1491 = vld [vmem:[#allocation10 + $0xd0] sm:$0xf]
        %v1492 = vld [vmem:[#allocation10 + $0xd4] sm:$0xf]
        %v1493 = vld [vmem:[#allocation10 + $0xd8] sm:$0xf]
        %v1494 = vld [vmem:[#allocation10 + $0xdc] sm:$0xf]
        %v1495 = vld [vmem:[#allocation10 + $0xe0] sm:$0xf]
        %v1496 = vld [vmem:[#allocation10 + $0xe4] sm:$0xf]
        %v1497 = vld [vmem:[#allocation10 + $0xe8] sm:$0xf]
        %v1498 = vld [vmem:[#allocation10 + $0xec] sm:$0xf]
        %v1499 = vld [vmem:[#allocation10 + $0xf0] sm:$0xf]
        %v1500 = vld [vmem:[#allocation10 + $0xf4] sm:$0xf]
        %v1501 = vld [vmem:[#allocation10 + $0xf8] sm:$0xf]
        %v1502 = vld [vmem:[#allocation10 + $0xfc] sm:$0xf]
        %v1503 = vld [vmem:[#allocation10 + $0x100] sm:$0xf]
        %v1504 = vld [vmem:[#allocation10 + $0x104] sm:$0xf]
        %v1505 = vld [vmem:[#allocation10 + $0x108] sm:$0xf]
        %v1506 = vld [vmem:[#allocation10 + $0x10c] sm:$0xf]
        %v1507 = vld [vmem:[#allocation10 + $0x110] sm:$0xf]
        %v1508 = vld [vmem:[#allocation10 + $0x114] sm:$0xf]
        %v1509 = vld [vmem:[#allocation10 + $0x118] sm:$0xf]
        %v1510 = vld [vmem:[#allocation10 + $0x11c] sm:$0xf]
        %v1511 = vld [vmem:[#allocation10 + $0x120] sm:$0xf]
        %v1512 = vld [vmem:[#allocation10 + $0x124] sm:$0xf]
        %v1513 = vld [vmem:[#allocation10 + $0x128] sm:$0xf]
        %v1514 = vld [vmem:[#allocation10 + $0x12c] sm:$0xf]
        %v1515 = vld [vmem:[#allocation10 + $0x130] sm:$0xf]
        %v1516 = vld [vmem:[#allocation10 + $0x134] sm:$0xf]
        %v1517 = vld [vmem:[#allocation10 + $0x138] sm:$0xf]
        %v1518 = vld [vmem:[#allocation10 + $0x13c] sm:$0xf]
        %v1519 = vld [vmem:[#allocation10 + $0x140] sm:$0xf]
        %v1520 = vld [vmem:[#allocation10 + $0x144] sm:$0xf]
        %v1521 = vld [vmem:[#allocation10 + $0x148] sm:$0xf]
        %v1522 = vld [vmem:[#allocation10 + $0x14c] sm:$0xf]
        %v1523 = vld [vmem:[#allocation10 + $0x150] sm:$0xf]
        %v1524 = vld [vmem:[#allocation10 + $0x154] sm:$0xf]
        %v1525 = vld [vmem:[#allocation10 + $0x158] sm:$0xf]
        %v1526 = vld [vmem:[#allocation10 + $0x15c] sm:$0xf]
        %v1527 = vld [vmem:[#allocation10 + $0x160] sm:$0xf]
        %v1528 = vld [vmem:[#allocation10 + $0x164] sm:$0xf]
        %v1529 = vld [vmem:[#allocation10 + $0x168] sm:$0xf]
        %v1530 = vld [vmem:[#allocation10 + $0x16c] sm:$0xf]
        %v1531 = vld [vmem:[#allocation10 + $0x170] sm:$0xf]
        %v1532 = vld [vmem:[#allocation10 + $0x174] sm:$0xf]
        %v1533 = vld [vmem:[#allocation10 + $0x178] sm:$0xf]
        %v1534 = vld [vmem:[#allocation10 + $0x17c] sm:$0xf]
        %v1535 = vld [vmem:[#allocation10 + $0x180] sm:$0xf]
        %v1536 = vld [vmem:[#allocation10 + $0x184] sm:$0xf]
        %v1537 = vld [vmem:[#allocation10 + $0x188] sm:$0xf]
        %v1538 = vld [vmem:[#allocation10 + $0x18c] sm:$0xf]
        %v1539 = vld [vmem:[#allocation10 + $0x190] sm:$0xf]
        %v1540 = vld [vmem:[#allocation10 + $0x194] sm:$0xf]
        %v1541 = vld [vmem:[#allocation10 + $0x198] sm:$0xf]
        %v1542 = vld [vmem:[#allocation10 + $0x19c] sm:$0xf]
        %v1543 = vld [vmem:[#allocation10 + $0x1a0] sm:$0xf]
        %v1544 = vld [vmem:[#allocation10 + $0x1a4] sm:$0xf]
        %v1545 = vld [vmem:[#allocation10 + $0x1a8] sm:$0xf]
        %v1546 = vld [vmem:[#allocation10 + $0x1ac] sm:$0xf]
        %v1547 = vld [vmem:[#allocation10 + $0x1b0] sm:$0xf]
        %v1548 = vld [vmem:[#allocation10 + $0x1b4] sm:$0xf]
        %v1549 = vld [vmem:[#allocation10 + $0x1b8] sm:$0xf]
        %v1550 = vld [vmem:[#allocation10 + $0x1bc] sm:$0xf]
        %v1551 = vld [vmem:[#allocation10 + $0x1c0] sm:$0xf]
        %v1552 = vld [vmem:[#allocation10 + $0x1c4] sm:$0xf]
        %v1553 = vld [vmem:[#allocation10 + $0x1c8] sm:$0xf]
        %v1554 = vld [vmem:[#allocation10 + $0x1cc] sm:$0xf]
        %v1555 = vld [vmem:[#allocation10 + $0x1d0] sm:$0xf]
        %v1556 = vld [vmem:[#allocation10 + $0x1d4] sm:$0xf]
        %v1557 = vld [vmem:[#allocation10 + $0x1d8] sm:$0xf]
        %v1558 = vld [vmem:[#allocation10 + $0x1dc] sm:$0xf]
        %v1559 = vld [vmem:[#allocation10 + $0x1e0] sm:$0xf]
        %v1560 = vld [vmem:[#allocation10 + $0x1e4] sm:$0xf]
        %v1561 = vld [vmem:[#allocation10 + $0x1e8] sm:$0xf]
        %v1562 = vld [vmem:[#allocation10 + $0x1ec] sm:$0xf]
        %v1563 = vld [vmem:[#allocation10 + $0x1f0] sm:$0xf]
        %v1564 = vld [vmem:[#allocation10 + $0x1f4] sm:$0xf]
        %v1565 = vld [vmem:[#allocation10 + $0x1f8] sm:$0xf]
        %v1566 = vld [vmem:[#allocation10 + $0x1fc] sm:$0xf]
        %v1567 = vld [vmem:[#allocation10 + $0x200] sm:$0xf]
        %v1568 = vld [vmem:[#allocation10 + $0x204] sm:$0xf]
        %v1569 = vld [vmem:[#allocation10 + $0x208] sm:$0xf]
        %v1570 = vld [vmem:[#allocation10 + $0x20c] sm:$0xf]
        %v1571 = vld [vmem:[#allocation10 + $0x210] sm:$0xf]
        %v1572 = vld [vmem:[#allocation10 + $0x214] sm:$0xf]
        %v1573 = vld [vmem:[#allocation10 + $0x218] sm:$0xf]
        %v1574 = vld [vmem:[#allocation10 + $0x21c] sm:$0xf]
        %v1575 = vld [vmem:[#allocation10 + $0x220] sm:$0xf]
        %v1576 = vld [vmem:[#allocation10 + $0x224] sm:$0xf]
        %v1577 = vld [vmem:[#allocation10 + $0x228] sm:$0xf]
        %v1578 = vld [vmem:[#allocation10 + $0x22c] sm:$0xf]
        %v1579 = vld [vmem:[#allocation10 + $0x230] sm:$0xf]
        %v1580 = vld [vmem:[#allocation10 + $0x234] sm:$0xf]
        %v1581 = vld [vmem:[#allocation10 + $0x238] sm:$0xf]
        %v1582 = vld [vmem:[#allocation10 + $0x23c] sm:$0xf]
        %v1583 = vpack.c.b16 %v1388, %v1385
        %v1584 = vpack.c.b16 %v1389, %v1386
        %v1585 = vpack.c.b16 %v1390, %v1387
        %v1586 = vpack.c.b16 %v1391, %v1388
        %v1587 = vpack.c.b16 %v1392, %v1389
        %v1588 = vpack.c.b16 %v1393, %v1390
        %v1589 = vpack.c.b16 %v1394, %v1391
        %v1590 = vpack.c.b16 %v1395, %v1392
        %v1591 = vpack.c.b16 %v1396, %v1393
        %v1592 = vpack.c.b16 %v1397, %v1394
        %v1593 = vpack.c.b16 %v1398, %v1395
        %v1594 = vpack.c.b16 %v1399, %v1396
        %v1595 = vpack.c.b16 %v1400, %v1397
        %v1596 = vpack.c.b16 %v1401, %v1398
        %v1597 = vpack.c.b16 %v1402, %v1399
        %v1598 = vpack.c.b16 %v1403, %v1400
        %v1599 = vpack.c.b16 %v1404, %v1401
        %v1600 = vpack.c.b16 %v1405, %v1402
        %v1601 = vpack.c.b16 %v1406, %v1403
        %v1602 = vpack.c.b16 %v1407, %v1404
        %v1603 = vpack.c.b16 %v1408, %v1405
        %v1604 = vpack.c.b16 %v1409, %v1406
        %v1605 = vpack.c.b16 %v1410, %v1407
        %v1606 = vpack.c.b16 %v1411, %v1408
        %v1607 = vpack.c.b16 %v1412, %v1409
        %v1608 = vpack.c.b16 %v1413, %v1410
        %v1609 = vpack.c.b16 %v1414, %v1411
        %v1610 = vpack.c.b16 %v1415, %v1412
        %v1611 = vpack.c.b16 %v1416, %v1413
        %v1612 = vpack.c.b16 %v1417, %v1414
        %v1613 = vpack.c.b16 %v1418, %v1415
        %v1614 = vpack.c.b16 %v1419, %v1416
        %v1615 = vpack.c.b16 %v1420, %v1417
        %v1616 = vpack.c.b16 %v1421, %v1418
        %v1617 = vpack.c.b16 %v1422, %v1419
        %v1618 = vpack.c.b16 %v1423, %v1420
        %v1619 = vpack.c.b16 %v1424, %v1421
        %v1620 = vpack.c.b16 %v1425, %v1422
        %v1621 = vpack.c.b16 %v1426, %v1423
        %v1622 = vpack.c.b16 %v1427, %v1424
        %v1623 = vpack.c.b16 %v1428, %v1425
        %v1624 = vpack.c.b16 %v1429, %v1426
        %v1625 = vpack.c.b16 %v1430, %v1427
        %v1626 = vpack.c.b16 %v1431, %v1428
        %v1627 = vpack.c.b16 %v1432, %v1429
        %v1628 = vpack.c.b16 %v1433, %v1430
        %v1629 = vpack.c.b16 %v1434, %v1431
        %v1630 = vpack.c.b16 %v1435, %v1432
        %v1631 = vpack.c.b16 %v1436, %v1433
        %v1632 = vpack.c.b16 %v1437, %v1434
        %v1633 = vpack.c.b16 %v1438, %v1435
        %v1829 = vunpack.c.l.b16 %v1439
        %v1830 = vunpack.c.l.b16 %v1440
        %v1831 = vunpack.c.l.b16 %v1441
        %v1832 = vunpack.c.l.b16 %v1442
        %v1833 = vunpack.c.l.b16 %v1443
        %v1834 = vunpack.c.l.b16 %v1444
        %v1835 = vunpack.c.l.b16 %v1445
        %v1836 = vunpack.c.l.b16 %v1446
        %v1837 = vunpack.c.l.b16 %v1447
        %v1838 = vunpack.c.l.b16 %v1448
        %v1839 = vunpack.c.l.b16 %v1449
        %v1840 = vunpack.c.l.b16 %v1450
        %v1841 = vunpack.c.l.b16 %v1451
        %v1842 = vunpack.c.l.b16 %v1452
        %v1843 = vunpack.c.l.b16 %v1453
        %v1844 = vunpack.c.l.b16 %v1454
        %v1845 = vunpack.c.l.b16 %v1455
        %v1846 = vunpack.c.l.b16 %v1456
        %v1847 = vunpack.c.l.b16 %v1457
        %v1848 = vunpack.c.l.b16 %v1458
        %v1849 = vunpack.c.l.b16 %v1459
        %v1850 = vunpack.c.l.b16 %v1460
        %v1851 = vunpack.c.l.b16 %v1461
        %v1852 = vunpack.c.l.b16 %v1462
        %v1853 = vunpack.c.l.b16 %v1463
        %v1854 = vunpack.c.l.b16 %v1464
        %v1855 = vunpack.c.l.b16 %v1465
        %v1856 = vunpack.c.l.b16 %v1466
        %v1857 = vunpack.c.l.b16 %v1467
        %v1858 = vunpack.c.l.b16 %v1468
        %v1859 = vunpack.c.l.b16 %v1469
        %v1860 = vunpack.c.l.b16 %v1470
        %v1861 = vunpack.c.l.b16 %v1471
        %v1862 = vunpack.c.l.b16 %v1472
        %v1863 = vunpack.c.l.b16 %v1473
        %v1864 = vunpack.c.l.b16 %v1474
        %v1865 = vunpack.c.l.b16 %v1475
        %v1866 = vunpack.c.l.b16 %v1476
        %v1867 = vunpack.c.l.b16 %v1477
        %v1868 = vunpack.c.l.b16 %v1478
        %v1869 = vunpack.c.l.b16 %v1479
        %v1870 = vunpack.c.l.b16 %v1480
        %v1871 = vunpack.c.l.b16 %v1481
        %v1872 = vunpack.c.l.b16 %v1482
        %v1873 = vunpack.c.l.b16 %v1483
        %v1874 = vunpack.c.l.b16 %v1484
        %v1875 = vunpack.c.l.b16 %v1485
        %v1876 = vunpack.c.l.b16 %v1486
        %v1877 = vunpack.c.l.b16 %v1487
        %v1878 = vunpack.c.l.b16 %v1488
        %v1879 = vunpack.c.l.b16 %v1489
        %v1880 = vunpack.c.l.b16 %v1490
        %v1881 = vunpack.c.l.b16 %v1491
        %v1882 = vunpack.c.l.b16 %v1492
        %v1883 = vunpack.c.l.b16 %v1493
        %v1884 = vunpack.c.l.b16 %v1494
        %v1885 = vunpack.c.l.b16 %v1495
        %v1886 = vunpack.c.l.b16 %v1496
        %v1887 = vunpack.c.l.b16 %v1497
        %v1888 = vunpack.c.l.b16 %v1498
        %v1889 = vunpack.c.l.b16 %v1499
        %v1890 = vunpack.c.l.b16 %v1500
        %v1891 = vunpack.c.l.b16 %v1501
        %v1892 = vunpack.c.l.b16 %v1502
        %v1893 = vunpack.c.l.b16 %v1503
        %v1894 = vunpack.c.l.b16 %v1504
        %v1895 = vunpack.c.l.b16 %v1505
        %v1896 = vunpack.c.l.b16 %v1506
        %v1897 = vunpack.c.l.b16 %v1507
        %v1898 = vunpack.c.l.b16 %v1508
        %v1899 = vunpack.c.l.b16 %v1509
        %v1900 = vunpack.c.l.b16 %v1510
        %v1901 = vunpack.c.l.b16 %v1511
        %v1902 = vunpack.c.l.b16 %v1512
        %v1903 = vunpack.c.l.b16 %v1513
        %v1904 = vunpack.c.l.b16 %v1514
        %v1905 = vunpack.c.l.b16 %v1515
        %v1906 = vunpack.c.l.b16 %v1516
        %v1907 = vunpack.c.l.b16 %v1517
        %v1908 = vunpack.c.l.b16 %v1518
        %v1909 = vunpack.c.l.b16 %v1519
        %v1910 = vunpack.c.l.b16 %v1520
        %v1911 = vunpack.c.l.b16 %v1521
        %v1912 = vunpack.c.l.b16 %v1522
        %v1913 = vunpack.c.l.b16 %v1523
        %v1914 = vunpack.c.l.b16 %v1524
        %v1915 = vunpack.c.l.b16 %v1525
        %v1916 = vunpack.c.l.b16 %v1526
        %v1917 = vunpack.c.l.b16 %v1527
        %v1918 = vunpack.c.l.b16 %v1528
        %v1919 = vunpack.c.l.b16 %v1529
        %v1920 = vunpack.c.l.b16 %v1530
        %v1921 = vunpack.c.l.b16 %v1531
        %v1922 = vunpack.c.l.b16 %v1532
        %v1923 = vunpack.c.l.b16 %v1533
        %v1924 = vunpack.c.l.b16 %v1534
        %v1925 = vunpack.c.l.b16 %v1535
        %v1926 = vunpack.c.l.b16 %v1536
        %v1927 = vunpack.c.l.b16 %v1537
        %v1928 = vunpack.c.l.b16 %v1538
        %v1929 = vunpack.c.l.b16 %v1539
        %v1930 = vunpack.c.l.b16 %v1540
        %v1931 = vunpack.c.l.b16 %v1541
        %v1932 = vunpack.c.l.b16 %v1542
        %v1933 = vunpack.c.l.b16 %v1543
        %v1934 = vunpack.c.l.b16 %v1544
        %v1935 = vunpack.c.l.b16 %v1545
        %v1936 = vunpack.c.l.b16 %v1546
        %v1937 = vunpack.c.l.b16 %v1547
        %v1938 = vunpack.c.l.b16 %v1548
        %v1939 = vunpack.c.l.b16 %v1549
        %v1940 = vunpack.c.l.b16 %v1550
        %v1941 = vunpack.c.l.b16 %v1551
        %v1942 = vunpack.c.l.b16 %v1552
        %v1943 = vunpack.c.l.b16 %v1553
        %v1944 = vunpack.c.l.b16 %v1554
        %v1945 = vunpack.c.l.b16 %v1555
        %v1946 = vunpack.c.l.b16 %v1556
        %v1947 = vunpack.c.l.b16 %v1557
        %v1948 = vunpack.c.l.b16 %v1558
        %v1949 = vunpack.c.l.b16 %v1559
        %v1950 = vunpack.c.l.b16 %v1560
        %v1951 = vunpack.c.l.b16 %v1561
        %v1952 = vunpack.c.l.b16 %v1562
        %v1953 = vunpack.c.l.b16 %v1563
        %v1954 = vunpack.c.l.b16 %v1564
        %v1955 = vunpack.c.l.b16 %v1565
        %v1956 = vunpack.c.l.b16 %v1566
        %v1957 = vunpack.c.l.b16 %v1567
        %v1958 = vunpack.c.l.b16 %v1568
        %v1959 = vunpack.c.l.b16 %v1569
        %v1960 = vunpack.c.l.b16 %v1570
        %v1961 = vunpack.c.l.b16 %v1571
        %v1962 = vunpack.c.l.b16 %v1572
        %v1963 = vunpack.c.l.b16 %v1573
        %v1964 = vunpack.c.l.b16 %v1574
        %v1965 = vunpack.c.l.b16 %v1575
        %v1966 = vunpack.c.l.b16 %v1576
        %v1967 = vunpack.c.l.b16 %v1577
        %v1968 = vunpack.c.l.b16 %v1578
        %v1969 = vunpack.c.l.b16 %v1579
        %v1970 = vunpack.c.l.b16 %v1580
        %v1971 = vunpack.c.l.b16 %v1581
        %v1972 = vunpack.c.l.b16 %v1582
        %v1973 = vpack.c.b16 %v1830, %v1829
        %v1974 = vpack.c.b16 %v1832, %v1831
        %v1975 = vpack.c.b16 %v1834, %v1833
        %v1976 = vpack.c.b16 %v1836, %v1835
        %v1977 = vpack.c.b16 %v1838, %v1837
        %v1978 = vpack.c.b16 %v1840, %v1839
        %v1979 = vpack.c.b16 %v1842, %v1841
        %v1980 = vpack.c.b16 %v1844, %v1843
        %v1981 = vpack.c.b16 %v1846, %v1845
        %v1982 = vpack.c.b16 %v1848, %v1847
        %v1983 = vpack.c.b16 %v1850, %v1849
        %v1984 = vpack.c.b16 %v1852, %v1851
        %v1985 = vpack.c.b16 %v1854, %v1853
        %v1986 = vpack.c.b16 %v1856, %v1855
        %v1987 = vpack.c.b16 %v1858, %v1857
        %v1988 = vpack.c.b16 %v1860, %v1859
        %v1989 = vpack.c.b16 %v1862, %v1861
        %v1990 = vpack.c.b16 %v1864, %v1863
        %v1991 = vpack.c.b16 %v1866, %v1865
        %v1992 = vpack.c.b16 %v1868, %v1867
        %v1993 = vpack.c.b16 %v1870, %v1869
        %v1994 = vpack.c.b16 %v1872, %v1871
        %v1995 = vpack.c.b16 %v1874, %v1873
        %v1996 = vpack.c.b16 %v1876, %v1875
        %v1997 = vpack.c.b16 %v1878, %v1877
        %v1998 = vpack.c.b16 %v1880, %v1879
        %v1999 = vpack.c.b16 %v1882, %v1881
        %v2000 = vpack.c.b16 %v1884, %v1883
        %v2001 = vpack.c.b16 %v1886, %v1885
        %v2002 = vpack.c.b16 %v1888, %v1887
        %v2003 = vpack.c.b16 %v1890, %v1889
        %v2004 = vpack.c.b16 %v1892, %v1891
        %v2005 = vpack.c.b16 %v1894, %v1893
        %v2006 = vpack.c.b16 %v1896, %v1895
        %v2007 = vpack.c.b16 %v1898, %v1897
        %v2008 = vpack.c.b16 %v1900, %v1899
        %v2009 = vpack.c.b16 %v1902, %v1901
        %v2010 = vpack.c.b16 %v1904, %v1903
        %v2011 = vpack.c.b16 %v1906, %v1905
        %v2012 = vpack.c.b16 %v1908, %v1907
        %v2013 = vpack.c.b16 %v1910, %v1909
        %v2014 = vpack.c.b16 %v1912, %v1911
        %v2015 = vpack.c.b16 %v1914, %v1913
        %v2016 = vpack.c.b16 %v1916, %v1915
        %v2017 = vpack.c.b16 %v1918, %v1917
        %v2018 = vpack.c.b16 %v1920, %v1919
        %v2019 = vpack.c.b16 %v1922, %v1921
        %v2020 = vpack.c.b16 %v1924, %v1923
        %v2021 = vpack.c.b16 %v1926, %v1925
        %v2022 = vpack.c.b16 %v1928, %v1927
        %v2023 = vpack.c.b16 %v1930, %v1929
        %v2024 = vpack.c.b16 %v1932, %v1931
        %v2025 = vpack.c.b16 %v1934, %v1933
        %v2026 = vpack.c.b16 %v1936, %v1935
        %v2027 = vpack.c.b16 %v1938, %v1937
        %v2028 = vpack.c.b16 %v1940, %v1939
        %v2029 = vpack.c.b16 %v1942, %v1941
        %v2030 = vpack.c.b16 %v1944, %v1943
        %v2031 = vpack.c.b16 %v1946, %v1945
        %v2032 = vpack.c.b16 %v1948, %v1947
        %v2033 = vpack.c.b16 %v1950, %v1949
        %v2034 = vpack.c.b16 %v1952, %v1951
        %v2035 = vpack.c.b16 %v1954, %v1953
        %v2036 = vpack.c.b16 %v1956, %v1955
        %v2037 = vpack.c.b16 %v1958, %v1957
        %v2038 = vpack.c.b16 %v1960, %v1959
        %v2039 = vpack.c.b16 %v1962, %v1961
        %v2040 = vpack.c.b16 %v1964, %v1963
        %v2041 = vpack.c.b16 %v1966, %v1965
        %v2042 = vpack.c.b16 %v1968, %v1967
        %v2043 = vpack.c.b16 %v1970, %v1969
        %v2044 = vpack.c.b16 %v1972, %v1971
        %2117 = vmatprep.subr.bf16.mxu0 0
        %2118 = vmatpush1.bf16.msra.mxu0 %v1973
        %2119 = vmatprep.subr.bf16.mxu0 0
        %2120 = vmatpush1.bf16.msra.mxu0 %v1974
        %2121 = vmatprep.subr.bf16.mxu0 0
        %2122 = vmatpush1.bf16.msra.mxu0 %v1975
        %2123 = vmatprep.subr.bf16.mxu0 0
        %2124 = vmatpush1.bf16.msra.mxu0 %v1976
        %2125 = vmatprep.subr.bf16.mxu0 0
        %2126 = vmatpush1.bf16.msra.mxu0 %v1977
        %2127 = vmatprep.subr.bf16.mxu0 0
        %2128 = vmatpush1.bf16.msra.mxu0 %v1978
        %2129 = vmatprep.subr.bf16.mxu0 0
        %2130 = vmatpush1.bf16.msra.mxu0 %v1979
        %2131 = vmatprep.subr.bf16.mxu0 0
        %2132 = vmatpush1.bf16.msra.mxu0 %v1980
        %2133 = vmatprep.subr.bf16.mxu0 0
        %2134 = vmatpush1.bf16.msra.mxu0 %v1981
        %2135 = vmatprep.subr.bf16.mxu0 0
        %2136 = vmatpush1.bf16.msra.mxu0 %v1982
        %2137 = vmatprep.subr.bf16.mxu0 0
        %2138 = vmatpush1.bf16.msra.mxu0 %v1983
        %2139 = vmatprep.subr.bf16.mxu0 0
        %2140 = vmatpush1.bf16.msra.mxu0 %v1984
        %2141 = vmatprep.subr.bf16.mxu0 0
        %2142 = vmatpush1.bf16.msra.mxu0 %v1985
        %2143 = vmatprep.subr.bf16.mxu0 0
        %2144 = vmatpush1.bf16.msra.mxu0 %v1986
        %2145 = vmatprep.subr.bf16.mxu0 0
        %2146 = vmatpush1.bf16.msra.mxu0 %v1987
        %2147 = vmatprep.subr.bf16.mxu0 0
        %2148 = vmatpush1.bf16.msra.mxu0 %v1988
        %2149 = vmatprep.mubr.bf16.mxu0 %v1584
        %2150 = vmatmul.mubr.bf16.gmra.mrb[0].mxu0 %v1583
        %v2151 = vpop.f32.mrb[0].mxu0
        %v2152 = vadd.f32 0.0, %v2151
        %v2153 = vpop.f32.mrb[0].mxu0
        %v2154 = vpop.f32.mrb[0].mxu0
        %v2155 = vadd.f32 0.0, %v2154
        %v2156 = vpop.f32.mrb[0].mxu0
        %2157 = vmatprep.mubr.bf16.mxu0 %v1590
        %2158 = vmatmul.mubr.bf16.gmra.mrb[0].mxu0 %v1589
        %v2159 = vpop.f32.mrb[0].mxu0
        %v2160 = vadd.f32 0.0, %v2159
        %v2161 = vpop.f32.mrb[0].mxu0
        %v2162 = vpop.f32.mrb[0].mxu0
        %v2163 = vadd.f32 0.0, %v2162
        %v2164 = vpop.f32.mrb[0].mxu0
        %2165 = vmatprep.mubr.bf16.mxu0 %v1596
        %2166 = vmatmul.mubr.bf16.gmra.mrb[0].mxu0 %v1595
        %v2167 = vpop.f32.mrb[0].mxu0
        %v2168 = vadd.f32 0.0, %v2167
        %v2169 = vpop.f32.mrb[0].mxu0
        %v2170 = vpop.f32.mrb[0].mxu0
        %v2171 = vadd.f32 0.0, %v2170
        %v2172 = vpop.f32.mrb[0].mxu0
        %2173 = vmatprep.mubr.bf16.mxu0 %v1602
        %2174 = vmatmul.mubr.bf16.gmra.mrb[0].mxu0 %v1601
        %v2175 = vpop.f32.mrb[0].mxu0
        %v2176 = vadd.f32 0.0, %v2175
        %v2177 = vpop.f32.mrb[0].mxu0
        %v2178 = vpop.f32.mrb[0].mxu0
        %v2179 = vadd.f32 0.0, %v2178
        %v2180 = vpop.f32.mrb[0].mxu0
        %2181 = vmatprep.mubr.bf16.mxu0 %v1608
        %2182 = vmatmul.mubr.bf16.gmra.mrb[0].mxu0 %v1607
        %v2183 = vpop.f32.mrb[0].mxu0
        %v2184 = vadd.f32 0.0, %v2183
        %v2185 = vpop.f32.mrb[0].mxu0
        %v2186 = vpop.f32.mrb[0].mxu0
        %v2187 = vadd.f32 0.0, %v2186
        %v2188 = vpop.f32.mrb[0].mxu0
        %2189 = vmatprep.mubr.bf16.mxu0 %v1614
        %2190 = vmatmul.mubr.bf16.gmra.mrb[0].mxu0 %v1613
        %v2191 = vpop.f32.mrb[0].mxu0
        %v2192 = vadd.f32 0.0, %v2191
        %v2193 = vpop.f32.mrb[0].mxu0
        %v2194 = vpop.f32.mrb[0].mxu0
        %v2195 = vadd.f32 0.0, %v2194
        %v2196 = vpop.f32.mrb[0].mxu0
        %2197 = vmatprep.mubr.bf16.mxu0 %v1620
        %2198 = vmatmul.mubr.bf16.gmra.mrb[0].mxu0 %v1619
        %v2199 = vpop.f32.mrb[0].mxu0
        %v2200 = vadd.f32 0.0, %v2199
        %v2201 = vpop.f32.mrb[0].mxu0
        %v2202 = vpop.f32.mrb[0].mxu0
        %v2203 = vadd.f32 0.0, %v2202
        %v2204 = vpop.f32.mrb[0].mxu0
        %2205 = vmatprep.mubr.bf16.mxu0 %v1626
        %2206 = vmatmul.mubr.bf16.gmra.mrb[0].mxu0 %v1625
        %v2207 = vpop.f32.mrb[0].mxu0
        %v2208 = vadd.f32 0.0, %v2207
        %v2209 = vpop.f32.mrb[0].mxu0
        %v2210 = vpop.f32.mrb[0].mxu0
        %v2211 = vadd.f32 0.0, %v2210
        %v2212 = vpop.f32.mrb[0].mxu0
        %2213 = vdwg.mxu0
        %2214 = vmatprep.subr.bf16.mxu0 0
        %2215 = vmatpush1.bf16.msra.mxu0 %v1989
        %2216 = vmatprep.subr.bf16.mxu0 0
        %2217 = vmatpush1.bf16.msra.mxu0 %v1990
        %2218 = vmatprep.subr.bf16.mxu0 0
        %2219 = vmatpush1.bf16.msra.mxu0 %v1991
        %2220 = vmatprep.subr.bf16.mxu0 0
        %2221 = vmatpush1.bf16.msra.mxu0 %v1992
        %2222 = vmatprep.subr.bf16.mxu0 0
        %2223 = vmatpush1.bf16.msra.mxu0 %v1993
        %2224 = vmatprep.subr.bf16.mxu0 0
        %2225 = vmatpush1.bf16.msra.mxu0 %v1994
        %2226 = vmatprep.subr.bf16.mxu0 0
        %2227 = vmatpush1.bf16.msra.mxu0 %v1995
        %2228 = vmatprep.subr.bf16.mxu0 0
        %2229 = vmatpush1.bf16.msra.mxu0 %v1996
        %2230 = vmatprep.subr.bf16.mxu0 0
        %2231 = vmatpush1.bf16.msra.mxu0 %v1997
        %2232 = vmatprep.subr.bf16.mxu0 0
        %2233 = vmatpush1.bf16.msra.mxu0 %v1998
        %2234 = vmatprep.subr.bf16.mxu0 0
        %2235 = vmatpush1.bf16.msra.mxu0 %v1999
        %2236 = vmatprep.subr.bf16.mxu0 0
        %2237 = vmatpush1.bf16.msra.mxu0 %v2000
        %2238 = vmatprep.subr.bf16.mxu0 0
        %2239 = vmatpush1.bf16.msra.mxu0 %v2001
        %2240 = vmatprep.subr.bf16.mxu0 0
        %2241 = vmatpush1.bf16.msra.mxu0 %v2002
        %2242 = vmatprep.subr.bf16.mxu0 0
        %2243 = vmatpush1.bf16.msra.mxu0 %v2003
        %2244 = vmatprep.subr.bf16.mxu0 0
        %2245 = vmatpush1.bf16.msra.mxu0 %v2004
        %2246 = vmatprep.mubr.bf16.mxu0 %v1586
        %2247 = vmatmul.mubr.bf16.gmra.mrb[0].mxu0 %v1585
        %v2248 = vpop.f32.mrb[0].mxu0
        %v2249 = vadd.f32 %v2152, %v2248
        %v2250 = vpop.f32.mrb[0].mxu0
        %v2251 = vpop.f32.mrb[0].mxu0
        %v2252 = vadd.f32 %v2155, %v2251
        %v2253 = vpop.f32.mrb[0].mxu0
        %2254 = vmatprep.mubr.bf16.mxu0 %v1592
        %2255 = vmatmul.mubr.bf16.gmra.mrb[0].mxu0 %v1591
        %v2256 = vpop.f32.mrb[0].mxu0
        %v2257 = vadd.f32 %v2160, %v2256
        %v2258 = vpop.f32.mrb[0].mxu0
        %v2259 = vpop.f32.mrb[0].mxu0
        %v2260 = vadd.f32 %v2163, %v2259
        %v2261 = vpop.f32.mrb[0].mxu0
        %2262 = vmatprep.mubr.bf16.mxu0 %v1598
        %2263 = vmatmul.mubr.bf16.gmra.mrb[0].mxu0 %v1597
        %v2264 = vpop.f32.mrb[0].mxu0
        %v2265 = vadd.f32 %v2168, %v2264
        %v2266 = vpop.f32.mrb[0].mxu0
        %v2267 = vpop.f32.mrb[0].mxu0
        %v2268 = vadd.f32 %v2171, %v2267
        %v2269 = vpop.f32.mrb[0].mxu0
        %2270 = vmatprep.mubr.bf16.mxu0 %v1604
        %2271 = vmatmul.mubr.bf16.gmra.mrb[0].mxu0 %v1603
        %v2272 = vpop.f32.mrb[0].mxu0
        %v2273 = vadd.f32 %v2176, %v2272
        %v2274 = vpop.f32.mrb[0].mxu0
        %v2275 = vpop.f32.mrb[0].mxu0
        %v2276 = vadd.f32 %v2179, %v2275
        %v2277 = vpop.f32.mrb[0].mxu0
        %2278 = vmatprep.mubr.bf16.mxu0 %v1610
        %2279 = vmatmul.mubr.bf16.gmra.mrb[0].mxu0 %v1609
        %v2280 = vpop.f32.mrb[0].mxu0
        %v2281 = vadd.f32 %v2184, %v2280
        %v2282 = vpop.f32.mrb[0].mxu0
        %v2283 = vpop.f32.mrb[0].mxu0
        %v2284 = vadd.f32 %v2187, %v2283
        %v2285 = vpop.f32.mrb[0].mxu0
        %2286 = vmatprep.mubr.bf16.mxu0 %v1616
        %2287 = vmatmul.mubr.bf16.gmra.mrb[0].mxu0 %v1615
        %v2288 = vpop.f32.mrb[0].mxu0
        %v2289 = vadd.f32 %v2192, %v2288
        %v2290 = vpop.f32.mrb[0].mxu0
        %v2291 = vpop.f32.mrb[0].mxu0
        %v2292 = vadd.f32 %v2195, %v2291
        %v2293 = vpop.f32.mrb[0].mxu0
        %2294 = vmatprep.mubr.bf16.mxu0 %v1622
        %2295 = vmatmul.mubr.bf16.gmra.mrb[0].mxu0 %v1621
        %v2296 = vpop.f32.mrb[0].mxu0
        %v2297 = vadd.f32 %v2200, %v2296
        %v2298 = vpop.f32.mrb[0].mxu0
        %v2299 = vpop.f32.mrb[0].mxu0
        %v2300 = vadd.f32 %v2203, %v2299
        %v2301 = vpop.f32.mrb[0].mxu0
        %2302 = vmatprep.mubr.bf16.mxu0 %v1628
        %2303 = vmatmul.mubr.bf16.gmra.mrb[0].mxu0 %v1627
        %v2304 = vpop.f32.mrb[0].mxu0
        %v2305 = vadd.f32 %v2208, %v2304
        %v2306 = vpop.f32.mrb[0].mxu0
        %v2307 = vpop.f32.mrb[0].mxu0
        %v2308 = vadd.f32 %v2211, %v2307
        %v2309 = vpop.f32.mrb[0].mxu0
        %2310 = vdwg.mxu0
        %2311 = vmatprep.subr.bf16.mxu0 0
        %2312 = vmatpush1.bf16.msra.mxu0 %v2005
        %2313 = vmatprep.subr.bf16.mxu0 0
        %2314 = vmatpush1.bf16.msra.mxu0 %v2006
        %2315 = vmatprep.subr.bf16.mxu0 0
        %2316 = vmatpush1.bf16.msra.mxu0 %v2007
        %2317 = vmatprep.subr.bf16.mxu0 0
        %2318 = vmatpush1.bf16.msra.mxu0 %v2008
        %2319 = vmatprep.subr.bf16.mxu0 0
        %2320 = vmatpush1.bf16.msra.mxu0 %v2009
        %2321 = vmatprep.subr.bf16.mxu0 0
        %2322 = vmatpush1.bf16.msra.mxu0 %v2010
        %2323 = vmatprep.subr.bf16.mxu0 0
        %2324 = vmatpush1.bf16.msra.mxu0 %v2011
        %2325 = vmatprep.subr.bf16.mxu0 0
        %2326 = vmatpush1.bf16.msra.mxu0 %v2012
        %2327 = vmatprep.subr.bf16.mxu0 0
        %2328 = vmatpush1.bf16.msra.mxu0 %v2013
        %2329 = vmatprep.subr.bf16.mxu0 0
        %2330 = vmatpush1.bf16.msra.mxu0 %v2014
        %2331 = vmatprep.subr.bf16.mxu0 0
        %2332 = vmatpush1.bf16.msra.mxu0 %v2015
        %2333 = vmatprep.subr.bf16.mxu0 0
        %2334 = vmatpush1.bf16.msra.mxu0 %v2016
        %2335 = vmatprep.subr.bf16.mxu0 0
        %2336 = vmatpush1.bf16.msra.mxu0 %v2017
        %2337 = vmatprep.subr.bf16.mxu0 0
        %2338 = vmatpush1.bf16.msra.mxu0 %v2018
        %2339 = vmatprep.subr.bf16.mxu0 0
        %2340 = vmatpush1.bf16.msra.mxu0 %v2019
        %2341 = vmatprep.subr.bf16.mxu0 0
        %2342 = vmatpush1.bf16.msra.mxu0 %v2020
        %2343 = vmatprep.mubr.bf16.mxu0 %v1588
        %2344 = vmatmul.mubr.bf16.gmra.mrb[0].mxu0 %v1587
        %v2345 = vpop.f32.mrb[0].mxu0
        %v2346 = vadd.f32 %v2249, %v2345
        %v2347 = vpop.f32.mrb[0].mxu0
        %v2348 = vpop.f32.mrb[0].mxu0
        %v2349 = vadd.f32 %v2252, %v2348
        %v2350 = vpop.f32.mrb[0].mxu0
        %2351 = vmatprep.mubr.bf16.mxu0 %v1594
        %2352 = vmatmul.mubr.bf16.gmra.mrb[0].mxu0 %v1593
        %v2353 = vpop.f32.mrb[0].mxu0
        %v2354 = vadd.f32 %v2257, %v2353
        %v2355 = vpop.f32.mrb[0].mxu0
        %v2356 = vpop.f32.mrb[0].mxu0
        %v2357 = vadd.f32 %v2260, %v2356
        %v2358 = vpop.f32.mrb[0].mxu0
        %2359 = vmatprep.mubr.bf16.mxu0 %v1600
        %2360 = vmatmul.mubr.bf16.gmra.mrb[0].mxu0 %v1599
        %v2361 = vpop.f32.mrb[0].mxu0
        %v2362 = vadd.f32 %v2265, %v2361
        %v2363 = vpop.f32.mrb[0].mxu0
        %v2364 = vpop.f32.mrb[0].mxu0
        %v2365 = vadd.f32 %v2268, %v2364
        %v2366 = vpop.f32.mrb[0].mxu0
        %2367 = vmatprep.mubr.bf16.mxu0 %v1606
        %2368 = vmatmul.mubr.bf16.gmra.mrb[0].mxu0 %v1605
        %v2369 = vpop.f32.mrb[0].mxu0
        %v2370 = vadd.f32 %v2273, %v2369
        %v2371 = vpop.f32.mrb[0].mxu0
        %v2372 = vpop.f32.mrb[0].mxu0
        %v2373 = vadd.f32 %v2276, %v2372
        %v2374 = vpop.f32.mrb[0].mxu0
        %2375 = vmatprep.mubr.bf16.mxu0 %v1612
        %2376 = vmatmul.mubr.bf16.gmra.mrb[0].mxu0 %v1611
        %v2377 = vpop.f32.mrb[0].mxu0
        %v2378 = vadd.f32 %v2281, %v2377
        %v2379 = vpop.f32.mrb[0].mxu0
        %v2380 = vpop.f32.mrb[0].mxu0
        %v2381 = vadd.f32 %v2284, %v2380
        %v2382 = vpop.f32.mrb[0].mxu0
        %2383 = vmatprep.mubr.bf16.mxu0 %v1618
        %2384 = vmatmul.mubr.bf16.gmra.mrb[0].mxu0 %v1617
        %v2385 = vpop.f32.mrb[0].mxu0
        %v2386 = vadd.f32 %v2289, %v2385
        %v2387 = vpop.f32.mrb[0].mxu0
        %v2388 = vpop.f32.mrb[0].mxu0
        %v2389 = vadd.f32 %v2292, %v2388
        %v2390 = vpop.f32.mrb[0].mxu0
        %2391 = vmatprep.mubr.bf16.mxu0 %v1624
        %2392 = vmatmul.mubr.bf16.gmra.mrb[0].mxu0 %v1623
        %v2393 = vpop.f32.mrb[0].mxu0
        %v2394 = vadd.f32 %v2297, %v2393
        %v2395 = vpop.f32.mrb[0].mxu0
        %v2396 = vpop.f32.mrb[0].mxu0
        %v2397 = vadd.f32 %v2300, %v2396
        %v2398 = vpop.f32.mrb[0].mxu0
        %2399 = vmatprep.mubr.bf16.mxu0 %v1630
        %2400 = vmatmul.mubr.bf16.gmra.mrb[0].mxu0 %v1629
        %v2401 = vpop.f32.mrb[0].mxu0
        %v2402 = vadd.f32 %v2305, %v2401
        %v2403 = vpop.f32.mrb[0].mxu0
        %v2404 = vpop.f32.mrb[0].mxu0
        %v2405 = vadd.f32 %v2308, %v2404
        %v2406 = vpop.f32.mrb[0].mxu0
        %2407 = vdwg.mxu0
        %2408 = vmatprep.subr.bf16.mxu0 0
        %2409 = vmatpush1.bf16.msra.mxu0 %v2021
        %2410 = vmatprep.subr.bf16.mxu0 0
        %2411 = vmatpush1.bf16.msra.mxu0 %v2022
        %2412 = vmatprep.subr.bf16.mxu0 0
        %2413 = vmatpush1.bf16.msra.mxu0 %v2023
        %2414 = vmatprep.subr.bf16.mxu0 0
        %2415 = vmatpush1.bf16.msra.mxu0 %v2024
        %2416 = vmatprep.subr.bf16.mxu0 0
        %2417 = vmatpush1.bf16.msra.mxu0 %v2025
        %2418 = vmatprep.subr.bf16.mxu0 0
        %2419 = vmatpush1.bf16.msra.mxu0 %v2026
        %2420 = vmatprep.subr.bf16.mxu0 0
        %2421 = vmatpush1.bf16.msra.mxu0 %v2027
        %2422 = vmatprep.subr.bf16.mxu0 0
        %2423 = vmatpush1.bf16.msra.mxu0 %v2028
        %2424 = vmatprep.subr.bf16.mxu0 0
        %2425 = vmatpush1.bf16.msra.mxu0 %v2029
        %2426 = vmatprep.subr.bf16.mxu0 0
        %2427 = vmatpush1.bf16.msra.mxu0 %v2030
        %2428 = vmatprep.subr.bf16.mxu0 0
        %2429 = vmatpush1.bf16.msra.mxu0 %v2031
        %2430 = vmatprep.subr.bf16.mxu0 0
        %2431 = vmatpush1.bf16.msra.mxu0 %v2032
        %2432 = vmatprep.subr.bf16.mxu0 0
        %2433 = vmatpush1.bf16.msra.mxu0 %v2033
        %2434 = vmatprep.subr.bf16.mxu0 0
        %2435 = vmatpush1.bf16.msra.mxu0 %v2034
        %2436 = vmatprep.subr.bf16.mxu0 0
        %2437 = vmatpush1.bf16.msra.mxu0 %v2035
        %2438 = vmatprep.subr.bf16.mxu0 0
        %2439 = vmatpush1.bf16.msra.mxu0 %v2036
        %2440 = vmatprep.mubr.bf16.mxu0 %v1590
        %2441 = vmatmul.mubr.bf16.gmra.mrb[0].mxu0 %v1589
        %v2442 = vpop.f32.mrb[0].mxu0
        %v2443 = vadd.f32 %v2346, %v2442
        %v2444 = vpop.f32.mrb[0].mxu0
        %v2445 = vpop.f32.mrb[0].mxu0
        %v2446 = vadd.f32 %v2349, %v2445
        %v2447 = vpop.f32.mrb[0].mxu0
        %2448 = vmatprep.mubr.bf16.mxu0 %v1596
        %2449 = vmatmul.mubr.bf16.gmra.mrb[0].mxu0 %v1595
        %v2450 = vpop.f32.mrb[0].mxu0
        %v2451 = vadd.f32 %v2354, %v2450
        %v2452 = vpop.f32.mrb[0].mxu0
        %v2453 = vpop.f32.mrb[0].mxu0
        %v2454 = vadd.f32 %v2357, %v2453
        %v2455 = vpop.f32.mrb[0].mxu0
        %2456 = vmatprep.mubr.bf16.mxu0 %v1602
        %2457 = vmatmul.mubr.bf16.gmra.mrb[0].mxu0 %v1601
        %v2458 = vpop.f32.mrb[0].mxu0
        %v2459 = vadd.f32 %v2362, %v2458
        %v2460 = vpop.f32.mrb[0].mxu0
        %v2461 = vpop.f32.mrb[0].mxu0
        %v2462 = vadd.f32 %v2365, %v2461
        %v2463 = vpop.f32.mrb[0].mxu0
        %2464 = vmatprep.mubr.bf16.mxu0 %v1608
        %2465 = vmatmul.mubr.bf16.gmra.mrb[0].mxu0 %v1607
        %v2466 = vpop.f32.mrb[0].mxu0
        %v2467 = vadd.f32 %v2370, %v2466
        %v2468 = vpop.f32.mrb[0].mxu0
        %v2469 = vpop.f32.mrb[0].mxu0
        %v2470 = vadd.f32 %v2373, %v2469
        %v2471 = vpop.f32.mrb[0].mxu0
        %2472 = vmatprep.mubr.bf16.mxu0 %v1614
        %2473 = vmatmul.mubr.bf16.gmra.mrb[0].mxu0 %v1613
        %v2474 = vpop.f32.mrb[0].mxu0
        %v2475 = vadd.f32 %v2378, %v2474
        %v2476 = vpop.f32.mrb[0].mxu0
        %v2477 = vpop.f32.mrb[0].mxu0
        %v2478 = vadd.f32 %v2381, %v2477
        %v2479 = vpop.f32.mrb[0].mxu0
        %2480 = vmatprep.mubr.bf16.mxu0 %v1620
        %2481 = vmatmul.mubr.bf16.gmra.mrb[0].mxu0 %v1619
        %v2482 = vpop.f32.mrb[0].mxu0
        %v2483 = vadd.f32 %v2386, %v2482
        %v2484 = vpop.f32.mrb[0].mxu0
        %v2485 = vpop.f32.mrb[0].mxu0
        %v2486 = vadd.f32 %v2389, %v2485
        %v2487 = vpop.f32.mrb[0].mxu0
        %2488 = vmatprep.mubr.bf16.mxu0 %v1626
        %2489 = vmatmul.mubr.bf16.gmra.mrb[0].mxu0 %v1625
        %v2490 = vpop.f32.mrb[0].mxu0
        %v2491 = vadd.f32 %v2394, %v2490
        %v2492 = vpop.f32.mrb[0].mxu0
        %v2493 = vpop.f32.mrb[0].mxu0
        %v2494 = vadd.f32 %v2397, %v2493
        %v2495 = vpop.f32.mrb[0].mxu0
        %2496 = vmatprep.mubr.bf16.mxu0 %v1632
        %2497 = vmatmul.mubr.bf16.gmra.mrb[0].mxu0 %v1631
        %v2498 = vpop.f32.mrb[0].mxu0
        %v2499 = vadd.f32 %v2402, %v2498
        %v2500 = vpop.f32.mrb[0].mxu0
        %v2501 = vpop.f32.mrb[0].mxu0
        %v2502 = vadd.f32 %v2405, %v2501
        %v2503 = vpop.f32.mrb[0].mxu0
        %2504 = vdwg.mxu0
        %2505 = vmatprep.subr.bf16.mxu0 0
        %2506 = vmatpush1.bf16.msra.mxu0 %v2037
        %2507 = vmatprep.subr.bf16.mxu0 0
        %2508 = vmatpush1.bf16.msra.mxu0 %v2038
        %2509 = vmatprep.subr.bf16.mxu0 0
        %2510 = vmatpush1.bf16.msra.mxu0 %v2039
        %2511 = vmatprep.subr.bf16.mxu0 0
        %2512 = vmatpush1.bf16.msra.mxu0 %v2040
        %2513 = vmatprep.subr.bf16.mxu0 0
        %2514 = vmatpush1.bf16.msra.mxu0 %v2041
        %2515 = vmatprep.subr.bf16.mxu0 0
        %2516 = vmatpush1.bf16.msra.mxu0 %v2042
        %2517 = vmatprep.subr.bf16.mxu0 0
        %2518 = vmatpush1.bf16.msra.mxu0 %v2043
        %2519 = vmatprep.subr.bf16.mxu0 0
        %2520 = vmatpush1.bf16.msra.mxu0 %v2044
        %2521 = vmatprep.subr.bf16.mxu0 0
        %2522 = vmatpush1.bf16.msra.mxu0 0
        %2523 = vmatprep.subr.bf16.mxu0 0
        %2524 = vmatpush1.bf16.msra.mxu0 0
        %2525 = vmatprep.subr.bf16.mxu0 0
        %2526 = vmatpush1.bf16.msra.mxu0 0
        %2527 = vmatprep.subr.bf16.mxu0 0
        %2528 = vmatpush1.bf16.msra.mxu0 0
        %2529 = vmatprep.subr.bf16.mxu0 0
        %2530 = vmatpush1.bf16.msra.mxu0 0
        %2531 = vmatprep.subr.bf16.mxu0 0
        %2532 = vmatpush1.bf16.msra.mxu0 0
        %2533 = vmatprep.subr.bf16.mxu0 0
        %2534 = vmatpush1.bf16.msra.mxu0 0
        %2535 = vmatprep.subr.bf16.mxu0 0
        %2536 = vmatpush1.bf16.msra.mxu0 0
        %2537 = vmatprep.mubr.bf16.mxu0 0
        %2538 = vmatmul.mubr.bf16.gmra.mrb[0].mxu0 %v1591
        %v2539 = vpop.f32.mrb[0].mxu0
        %v2540 = vadd.f32 %v2443, %v2539
        %v2541 = vpop.f32.mrb[0].mxu0
        %v2542 = vpop.f32.mrb[0].mxu0
        %v2543 = vadd.f32 %v2446, %v2542
        %v2544 = vpop.f32.mrb[0].mxu0
        %2545 = vmatprep.mubr.bf16.mxu0 0
        %2546 = vmatmul.mubr.bf16.gmra.mrb[0].mxu0 %v1597
        %v2547 = vpop.f32.mrb[0].mxu0
        %v2548 = vadd.f32 %v2451, %v2547
        %v2549 = vpop.f32.mrb[0].mxu0
        %v2550 = vpop.f32.mrb[0].mxu0
        %v2551 = vadd.f32 %v2454, %v2550
        %v2552 = vpop.f32.mrb[0].mxu0
        %2553 = vmatprep.mubr.bf16.mxu0 0
        %2554 = vmatmul.mubr.bf16.gmra.mrb[0].mxu0 %v1603
        %v2555 = vpop.f32.mrb[0].mxu0
        %v2556 = vadd.f32 %v2459, %v2555
        %v2557 = vpop.f32.mrb[0].mxu0
        %v2558 = vpop.f32.mrb[0].mxu0
        %v2559 = vadd.f32 %v2462, %v2558
        %v2560 = vpop.f32.mrb[0].mxu0
        %2561 = vmatprep.mubr.bf16.mxu0 0
        %2562 = vmatmul.mubr.bf16.gmra.mrb[0].mxu0 %v1609
        %v2563 = vpop.f32.mrb[0].mxu0
        %v2564 = vadd.f32 %v2467, %v2563
        %v2565 = vpop.f32.mrb[0].mxu0
        %v2566 = vpop.f32.mrb[0].mxu0
        %v2567 = vadd.f32 %v2470, %v2566
        %v2568 = vpop.f32.mrb[0].mxu0
        %2569 = vmatprep.mubr.bf16.mxu0 0
        %2570 = vmatmul.mubr.bf16.gmra.mrb[0].mxu0 %v1615
        %v2571 = vpop.f32.mrb[0].mxu0
        %v2572 = vadd.f32 %v2475, %v2571
        %v2573 = vpop.f32.mrb[0].mxu0
        %v2574 = vpop.f32.mrb[0].mxu0
        %v2575 = vadd.f32 %v2478, %v2574
        %v2576 = vpop.f32.mrb[0].mxu0
        %2577 = vmatprep.mubr.bf16.mxu0 0
        %2578 = vmatmul.mubr.bf16.gmra.mrb[0].mxu0 %v1621
        %v2579 = vpop.f32.mrb[0].mxu0
        %v2580 = vadd.f32 %v2483, %v2579
        %v2581 = vpop.f32.mrb[0].mxu0
        %v2582 = vpop.f32.mrb[0].mxu0
        %v2583 = vadd.f32 %v2486, %v2582
        %v2584 = vpop.f32.mrb[0].mxu0
        %2585 = vmatprep.mubr.bf16.mxu0 0
        %2586 = vmatmul.mubr.bf16.gmra.mrb[0].mxu0 %v1627
        %v2587 = vpop.f32.mrb[0].mxu0
        %v2588 = vadd.f32 %v2491, %v2587
        %v2589 = vpop.f32.mrb[0].mxu0
        %v2590 = vpop.f32.mrb[0].mxu0
        %v2591 = vadd.f32 %v2494, %v2590
        %v2592 = vpop.f32.mrb[0].mxu0
        %2593 = vmatprep.mubr.bf16.mxu0 0
        %2594 = vmatmul.mubr.bf16.gmra.mrb[0].mxu0 %v1633
        %v2595 = vpop.f32.mrb[0].mxu0
        %v2596 = vadd.f32 %v2499, %v2595
        %v2597 = vpop.f32.mrb[0].mxu0
        %v2598 = vpop.f32.mrb[0].mxu0
        %v2599 = vadd.f32 %v2502, %v2598
        %v2600 = vpop.f32.mrb[0].mxu0
        %2601 = vdwg.mxu0
        %v2602 = vld [vmem:[#allocation16] sm:$0x1]
        %v2604 = vlaneseq
        %v2605 = vshrl.u32 %v2604, 7
        %v2606 = vsub.s32 0, %v2605
        %v2607 = vrot.slane %v2602, %v2606
        %v2609 = vmul.f32 %v2540, %v2607
        %v2610 = vmul.f32 %v2543, %v2607
        %v2611 = vmul.f32 %v2548, %v2607
        %v2612 = vmul.f32 %v2551, %v2607
        %v2613 = vmul.f32 %v2556, %v2607
        %v2614 = vmul.f32 %v2559, %v2607
        %v2615 = vmul.f32 %v2564, %v2607
        %v2616 = vmul.f32 %v2567, %v2607
        %v2617 = vmul.f32 %v2572, %v2607
        %v2618 = vmul.f32 %v2575, %v2607
        %v2619 = vmul.f32 %v2580, %v2607
        %v2620 = vmul.f32 %v2583, %v2607
        %v2621 = vmul.f32 %v2588, %v2607
        %v2622 = vmul.f32 %v2591, %v2607
        %v2623 = vmul.f32 %v2596, %v2607
        %v2624 = vmul.f32 %v2599, %v2607
        %v2625 = vld [vmem:[#allocation17] sm:$0x1]
        %v2627 = vlaneseq
        %v2628 = vshrl.u32 %v2627, 7
        %v2629 = vsub.s32 0, %v2628
        %v2630 = vrot.slane %v2625, %v2629
        %v2632 = vadd.f32 %v2609, %v2630
        %v2633 = vadd.f32 %v2610, %v2630
        %v2634 = vadd.f32 %v2611, %v2630
        %v2635 = vadd.f32 %v2612, %v2630
        %v2636 = vadd.f32 %v2613, %v2630
        %v2637 = vadd.f32 %v2614, %v2630
        %v2638 = vadd.f32 %v2615, %v2630
        %v2639 = vadd.f32 %v2616, %v2630
        %v2640 = vadd.f32 %v2617, %v2630
        %v2641 = vadd.f32 %v2618, %v2630
        %v2642 = vadd.f32 %v2619, %v2630
        %v2643 = vadd.f32 %v2620, %v2630
        %v2644 = vadd.f32 %v2621, %v2630
        %v2645 = vadd.f32 %v2622, %v2630
        %v2646 = vadd.f32 %v2623, %v2630
        %v2647 = vadd.f32 %v2624, %v2630
        %v2648 = vmax.f32 %v2632, 0.0
        %v2649 = vmax.f32 %v2633, 0.0
        %v2650 = vmax.f32 %v2634, 0.0
        %v2651 = vmax.f32 %v2635, 0.0
        %v2652 = vmax.f32 %v2636, 0.0
        %v2653 = vmax.f32 %v2637, 0.0
        %v2654 = vmax.f32 %v2638, 0.0
        %v2655 = vmax.f32 %v2639, 0.0
        %v2656 = vmax.f32 %v2640, 0.0
        %v2657 = vmax.f32 %v2641, 0.0
        %v2658 = vmax.f32 %v2642, 0.0
        %v2659 = vmax.f32 %v2643, 0.0
        %v2660 = vmax.f32 %v2644, 0.0
        %v2661 = vmax.f32 %v2645, 0.0
        %v2662 = vmax.f32 %v2646, 0.0
        %v2663 = vmax.f32 %v2647, 0.0
        %v2664 = vpack.c.bf16 %v2649, %v2648
        %v2665 = vpack.c.bf16 %v2651, %v2650
        %v2666 = vpack.c.bf16 %v2653, %v2652
        %v2667 = vpack.c.bf16 %v2655, %v2654
        %v2668 = vpack.c.bf16 %v2657, %v2656
        %v2669 = vpack.c.bf16 %v2659, %v2658
        %v2670 = vpack.c.bf16 %v2661, %v2660
        %v2671 = vpack.c.bf16 %v2663, %v2662
        %v2672 = vld [vmem:[#allocation11] sm:$0xf]
        %v2673 = vld [vmem:[#allocation11 + $0x4] sm:$0xf]
        %v2674 = vld [vmem:[#allocation11 + $0x8] sm:$0xf]
        %v2675 = vld [vmem:[#allocation11 + $0xc] sm:$0xf]
        %v2676 = vld [vmem:[#allocation11 + $0x10] sm:$0xf]
        %v2677 = vld [vmem:[#allocation11 + $0x14] sm:$0xf]
        %v2678 = vld [vmem:[#allocation11 + $0x18] sm:$0xf]
        %v2679 = vld [vmem:[#allocation11 + $0x1c] sm:$0xf]
        %v2680 = vld [vmem:[#allocation11 + $0x20] sm:$0xf]
        %v2681 = vld [vmem:[#allocation11 + $0x24] sm:$0xf]
        %v2682 = vld [vmem:[#allocation11 + $0x28] sm:$0xf]
        %v2683 = vld [vmem:[#allocation11 + $0x2c] sm:$0xf]
        %v2684 = vld [vmem:[#allocation11 + $0x30] sm:$0xf]
        %v2685 = vld [vmem:[#allocation11 + $0x34] sm:$0xf]
        %v2686 = vld [vmem:[#allocation11 + $0x38] sm:$0xf]
        %v2687 = vld [vmem:[#allocation11 + $0x3c] sm:$0xf]
        %v2704 = vunpack.c.l.b16 %v2672
        %v2705 = vunpack.c.l.b16 %v2673
        %v2706 = vunpack.c.l.b16 %v2674
        %v2707 = vunpack.c.l.b16 %v2675
        %v2708 = vunpack.c.l.b16 %v2676
        %v2709 = vunpack.c.l.b16 %v2677
        %v2710 = vunpack.c.l.b16 %v2678
        %v2711 = vunpack.c.l.b16 %v2679
        %v2712 = vunpack.c.l.b16 %v2680
        %v2713 = vunpack.c.l.b16 %v2681
        %v2714 = vunpack.c.l.b16 %v2682
        %v2715 = vunpack.c.l.b16 %v2683
        %v2716 = vunpack.c.l.b16 %v2684
        %v2717 = vunpack.c.l.b16 %v2685
        %v2718 = vunpack.c.l.b16 %v2686
        %v2719 = vunpack.c.l.b16 %v2687
        %v2720 = vpack.c.b16 %v2705, %v2704
        %v2721 = vpack.c.b16 %v2707, %v2706
        %v2722 = vpack.c.b16 %v2709, %v2708
        %v2723 = vpack.c.b16 %v2711, %v2710
        %v2724 = vpack.c.b16 %v2713, %v2712
        %v2725 = vpack.c.b16 %v2715, %v2714
        %v2726 = vpack.c.b16 %v2717, %v2716
        %v2727 = vpack.c.b16 %v2719, %v2718
        %2736 = vmatprep.subr.bf16.mxu0 0
        %2737 = vmatpush1.bf16.msra.mxu0 %v2720
        %2738 = vmatprep.subr.bf16.mxu0 0
        %2739 = vmatpush1.bf16.msra.mxu0 %v2721
        %2740 = vmatprep.subr.bf16.mxu0 0
        %2741 = vmatpush1.bf16.msra.mxu0 %v2722
        %2742 = vmatprep.subr.bf16.mxu0 0
        %2743 = vmatpush1.bf16.msra.mxu0 %v2723
        %2744 = vmatprep.subr.bf16.mxu0 0
        %2745 = vmatpush1.bf16.msra.mxu0 %v2724
        %2746 = vmatprep.subr.bf16.mxu0 0
        %2747 = vmatpush1.bf16.msra.mxu0 %v2725
        %2748 = vmatprep.subr.bf16.mxu0 0
        %2749 = vmatpush1.bf16.msra.mxu0 %v2726
        %2750 = vmatprep.subr.bf16.mxu0 0
        %2751 = vmatpush1.bf16.msra.mxu0 %v2727
        %2752 = vmatprep.subr.bf16.mxu0 0
        %2753 = vmatpush1.bf16.msra.mxu0 0
        %2754 = vmatprep.subr.bf16.mxu0 0
        %2755 = vmatpush1.bf16.msra.mxu0 0
        %2756 = vmatprep.subr.bf16.mxu0 0
        %2757 = vmatpush1.bf16.msra.mxu0 0
        %2758 = vmatprep.subr.bf16.mxu0 0
        %2759 = vmatpush1.bf16.msra.mxu0 0
        %2760 = vmatprep.subr.bf16.mxu0 0
        %2761 = vmatpush1.bf16.msra.mxu0 0
        %2762 = vmatprep.subr.bf16.mxu0 0
        %2763 = vmatpush1.bf16.msra.mxu0 0
        %2764 = vmatprep.subr.bf16.mxu0 0
        %2765 = vmatpush1.bf16.msra.mxu0 0
        %2766 = vmatprep.subr.bf16.mxu0 0
        %2767 = vmatpush1.bf16.msra.mxu0 0
        %2768 = vmatprep.mubr.bf16.mxu0 0
        %2769 = vmatmul.mubr.bf16.gmra.mrb[0].mxu0 %v2664
        %v2770 = vpop.f32.mrb[0].mxu0
        %v2771 = vadd.f32 0.0, %v2770
        %v2772 = vpop.f32.mrb[0].mxu0
        %v2773 = vpop.f32.mrb[0].mxu0
        %v2774 = vadd.f32 0.0, %v2773
        %v2775 = vpop.f32.mrb[0].mxu0
        %2776 = vmatprep.mubr.bf16.mxu0 0
        %2777 = vmatmul.mubr.bf16.gmra.mrb[0].mxu0 %v2665
        %v2778 = vpop.f32.mrb[0].mxu0
        %v2779 = vadd.f32 0.0, %v2778
        %v2780 = vpop.f32.mrb[0].mxu0
        %v2781 = vpop.f32.mrb[0].mxu0
        %v2782 = vadd.f32 0.0, %v2781
        %v2783 = vpop.f32.mrb[0].mxu0
        %2784 = vmatprep.mubr.bf16.mxu0 0
        %2785 = vmatmul.mubr.bf16.gmra.mrb[0].mxu0 %v2666
        %v2786 = vpop.f32.mrb[0].mxu0
        %v2787 = vadd.f32 0.0, %v2786
        %v2788 = vpop.f32.mrb[0].mxu0
        %v2789 = vpop.f32.mrb[0].mxu0
        %v2790 = vadd.f32 0.0, %v2789
        %v2791 = vpop.f32.mrb[0].mxu0
        %2792 = vmatprep.mubr.bf16.mxu0 0
        %2793 = vmatmul.mubr.bf16.gmra.mrb[0].mxu0 %v2667
        %v2794 = vpop.f32.mrb[0].mxu0
        %v2795 = vadd.f32 0.0, %v2794
        %v2796 = vpop.f32.mrb[0].mxu0
        %v2797 = vpop.f32.mrb[0].mxu0
        %v2798 = vadd.f32 0.0, %v2797
        %v2799 = vpop.f32.mrb[0].mxu0
        %2800 = vmatprep.mubr.bf16.mxu0 0
        %2801 = vmatmul.mubr.bf16.gmra.mrb[0].mxu0 %v2668
        %v2802 = vpop.f32.mrb[0].mxu0
        %v2803 = vadd.f32 0.0, %v2802
        %v2804 = vpop.f32.mrb[0].mxu0
        %v2805 = vpop.f32.mrb[0].mxu0
        %v2806 = vadd.f32 0.0, %v2805
        %v2807 = vpop.f32.mrb[0].mxu0
        %2808 = vmatprep.mubr.bf16.mxu0 0
        %2809 = vmatmul.mubr.bf16.gmra.mrb[0].mxu0 %v2669
        %v2810 = vpop.f32.mrb[0].mxu0
        %v2811 = vadd.f32 0.0, %v2810
        %v2812 = vpop.f32.mrb[0].mxu0
        %v2813 = vpop.f32.mrb[0].mxu0
        %v2814 = vadd.f32 0.0, %v2813
        %v2815 = vpop.f32.mrb[0].mxu0
        %2816 = vmatprep.mubr.bf16.mxu0 0
        %2817 = vmatmul.mubr.bf16.gmra.mrb[0].mxu0 %v2670
        %v2818 = vpop.f32.mrb[0].mxu0
        %v2819 = vadd.f32 0.0, %v2818
        %v2820 = vpop.f32.mrb[0].mxu0
        %v2821 = vpop.f32.mrb[0].mxu0
        %v2822 = vadd.f32 0.0, %v2821
        %v2823 = vpop.f32.mrb[0].mxu0
        %2824 = vmatprep.mubr.bf16.mxu0 0
        %2825 = vmatmul.mubr.bf16.gmra.mrb[0].mxu0 %v2671
        %v2826 = vpop.f32.mrb[0].mxu0
        %v2827 = vadd.f32 0.0, %v2826
        %v2828 = vpop.f32.mrb[0].mxu0
        %v2829 = vpop.f32.mrb[0].mxu0
        %v2830 = vadd.f32 0.0, %v2829
        %v2831 = vpop.f32.mrb[0].mxu0
        %2832 = vdwg.mxu0
        %v2833 = vld [vmem:[#allocation19] sm:$0x1]
        %v2835 = vlaneseq
        %v2836 = vshrl.u32 %v2835, 7
        %v2837 = vsub.s32 0, %v2836
        %v2838 = vrot.slane %v2833, %v2837
        %v2840 = vmul.f32 %v2771, %v2838
        %v2841 = vmul.f32 %v2774, %v2838
        %v2842 = vmul.f32 %v2779, %v2838
        %v2843 = vmul.f32 %v2782, %v2838
        %v2844 = vmul.f32 %v2787, %v2838
        %v2845 = vmul.f32 %v2790, %v2838
        %v2846 = vmul.f32 %v2795, %v2838
        %v2847 = vmul.f32 %v2798, %v2838
        %v2848 = vmul.f32 %v2803, %v2838
        %v2849 = vmul.f32 %v2806, %v2838
        %v2850 = vmul.f32 %v2811, %v2838
        %v2851 = vmul.f32 %v2814, %v2838
        %v2852 = vmul.f32 %v2819, %v2838
        %v2853 = vmul.f32 %v2822, %v2838
        %v2854 = vmul.f32 %v2827, %v2838
        %v2855 = vmul.f32 %v2830, %v2838
        %v2856 = vld [vmem:[#allocation20] sm:$0x1]
        %v2858 = vlaneseq
        %v2859 = vshrl.u32 %v2858, 7
        %v2860 = vsub.s32 0, %v2859
        %v2861 = vrot.slane %v2856, %v2860
        %v2863 = vadd.f32 %v2840, %v2861
        %v2864 = vadd.f32 %v2841, %v2861
        %v2865 = vadd.f32 %v2842, %v2861
        %v2866 = vadd.f32 %v2843, %v2861
        %v2867 = vadd.f32 %v2844, %v2861
        %v2868 = vadd.f32 %v2845, %v2861
        %v2869 = vadd.f32 %v2846, %v2861
        %v2870 = vadd.f32 %v2847, %v2861
        %v2871 = vadd.f32 %v2848, %v2861
        %v2872 = vadd.f32 %v2849, %v2861
        %v2873 = vadd.f32 %v2850, %v2861
        %v2874 = vadd.f32 %v2851, %v2861
        %v2875 = vadd.f32 %v2852, %v2861
        %v2876 = vadd.f32 %v2853, %v2861
        %v2877 = vadd.f32 %v2854, %v2861
        %v2878 = vadd.f32 %v2855, %v2861
        %v2879 = vunpack.c.l.bf16 %v684
        %v2880 = vunpack.c.l.bf16 %v685
        %v2881 = vunpack.c.l.bf16 %v686
        %v2882 = vunpack.c.l.bf16 %v687
        %v2883 = vunpack.c.l.bf16 %v688
        %v2884 = vunpack.c.l.bf16 %v689
        %v2885 = vunpack.c.l.bf16 %v690
        %v2886 = vunpack.c.l.bf16 %v691
        %v2887 = vunpack.c.l.bf16 %v692
        %v2888 = vunpack.c.l.bf16 %v693
        %v2889 = vunpack.c.l.bf16 %v694
        %v2890 = vunpack.c.l.bf16 %v695
        %v2891 = vunpack.c.l.bf16 %v696
        %v2892 = vunpack.c.l.bf16 %v697
        %v2893 = vunpack.c.l.bf16 %v698
        %v2894 = vunpack.c.l.bf16 %v699
        %v2895 = vadd.f32 %v2863, %v2879
        %v2896 = vadd.f32 %v2864, %v2880
        %v2897 = vadd.f32 %v2865, %v2881
        %v2898 = vadd.f32 %v2866, %v2882
        %v2899 = vadd.f32 %v2867, %v2883
        %v2900 = vadd.f32 %v2868, %v2884
        %v2901 = vadd.f32 %v2869, %v2885
        %v2902 = vadd.f32 %v2870, %v2886
        %v2903 = vadd.f32 %v2871, %v2887
        %v2904 = vadd.f32 %v2872, %v2888
        %v2905 = vadd.f32 %v2873, %v2889
        %v2906 = vadd.f32 %v2874, %v2890
        %v2907 = vadd.f32 %v2875, %v2891
        %v2908 = vadd.f32 %v2876, %v2892
        %v2909 = vadd.f32 %v2877, %v2893
        %v2910 = vadd.f32 %v2878, %v2894
        %v2911 = vmax.f32 %v2895, 0.0
        %v2912 = vmax.f32 %v2896, 0.0
        %v2913 = vmax.f32 %v2897, 0.0
        %v2914 = vmax.f32 %v2898, 0.0
        %v2915 = vmax.f32 %v2899, 0.0
        %v2916 = vmax.f32 %v2900, 0.0
        %v2917 = vmax.f32 %v2901, 0.0
        %v2918 = vmax.f32 %v2902, 0.0
        %v2919 = vmax.f32 %v2903, 0.0
        %v2920 = vmax.f32 %v2904, 0.0
        %v2921 = vmax.f32 %v2905, 0.0
        %v2922 = vmax.f32 %v2906, 0.0
        %v2923 = vmax.f32 %v2907, 0.0
        %v2924 = vmax.f32 %v2908, 0.0
        %v2925 = vmax.f32 %v2909, 0.0
        %v2926 = vmax.f32 %v2910, 0.0
        %2927 = vst [vmem:[%s671] sm:$0xff] %v2911
        %2928 = vst [vmem:[%s671 + $0x8] sm:$0xff] %v2912
        %2929 = vst [vmem:[%s671 + $0x10] sm:$0xff] %v2913
        %2930 = vst [vmem:[%s671 + $0x18] sm:$0xff] %v2914
        %2931 = vst [vmem:[%s671 + $0x20] sm:$0xff] %v2915
        %2932 = vst [vmem:[%s671 + $0x28] sm:$0xff] %v2916
        %2933 = vst [vmem:[%s671 + $0x30] sm:$0xff] %v2917
        %2934 = vst [vmem:[%s671 + $0x38] sm:$0xff] %v2918
        %2935 = vst [vmem:[%s671 + $0x40] sm:$0xff] %v2919
        %2936 = vst [vmem:[%s671 + $0x48] sm:$0xff] %v2920
        %2937 = vst [vmem:[%s671 + $0x50] sm:$0xff] %v2921
        %2938 = vst [vmem:[%s671 + $0x58] sm:$0xff] %v2922
        %2939 = vst [vmem:[%s671 + $0x60] sm:$0xff] %v2923
        %2940 = vst [vmem:[%s671 + $0x68] sm:$0xff] %v2924
        %2941 = vst [vmem:[%s671 + $0x70] sm:$0xff] %v2925
        %2942 = vst [vmem:[%s671 + $0x78] sm:$0xff] %v2926
        %s2943 = sand.u32 %s348, 1
        %s2944 = scalar_lea.sflag [#allocation4], %s2943
        %s2945 = sand.u32 %s348, 1
        %s2946 = smul.addr %s2945, 128
        %s2947 = scalar_lea.vmem [#allocation22], %s2946
        // Predicated region
        $region117: #{tpu_custom_call.1} parent=67 // pred_check
          %p2948 = pneg %p358
        $region118: #{tpu_custom_call.1} parent=67 // pred_check_branch
          %2950 = sbr.rel (%p2948) target = $region120
        $region119: #{tpu_custom_call.1} parent=67 // pred_region
          %s2951 = smul.u32 16, %s42
          %s2953 = ssub.s32 2048, 2048
          %2954 = vsyncadd %s2944, %s2953
          %s2955 = smul.addr %s41, 16
          %s2956 = sadd.s32 %s2951, %s2955
          %s2957 = smul.addr %s2956, 128
          %s2958 = scalar_lea.hbm %s12, %s2957
          %s2959 = sshll.u32 %s2947, 4
          %s2960 = int_to_ptr.vmem [resolvable:$true] %s2959
          %2965 = dma.vmem_to_hbm [thread:$0]  %s2960, 2048, %s2958, %s2944, 128, 128, 8
        $region120: #{tpu_custom_call.1} parent=67 // pred_fallthru
          _
      $region68: #{tpu_custom_call.1} parent=5 // pred_fallthru
        _
      %p2966 = scmp.le.s32.totalorder 2, %s32
      // Predicated region
      $region121: #{tpu_custom_call.1} parent=5 // pred_check
        %p2967 = pneg %p2966
      $region122: #{tpu_custom_call.1} parent=5 // pred_check_branch
        %2969 = sbr.rel (%p2967) target = $region124
      $region123: #{tpu_custom_call.1} parent=5 // pred_region
        %s2970 = ssub.s32 %s32, 2
        // Predicated region
        $region125: #{tpu_custom_call.1} parent=123 // pred_check
          %p2971 = pneg %p364
        $region126: #{tpu_custom_call.1} parent=123 // pred_check_branch
          %2973 = sbr.rel (%p2971) target = $region128
        $region127: #{tpu_custom_call.1} parent=123 // pred_region
          %s2974 = sand.u32 %s349, 1
          %s2975 = scalar_lea.sflag [#allocation4], %s2974
          %s2976 = sand.u32 %s349, 1
          %s2977 = smul.addr %s2976, 128
          %s2978 = scalar_lea.vmem [#allocation22], %s2977
          %2979 = dma.done %s2975, 2048
        $region128: #{tpu_custom_call.1} parent=123 // pred_fallthru
          _
      $region124: #{tpu_custom_call.1} parent=5 // pred_fallthru
        _
    $region6: #{tpu_custom_call.1} parent=1 // loop_footer
      %s36 = sadd.s32 1, %s32
    $region7: #{tpu_custom_call.1} parent=1 // loop_footer_branch
      %31 = sbr.rel target = $region3
    $region8: #{tpu_custom_call.1} parent=1 // loop_exit
      _
    %2980 = vsyncpa [#allocation3], 1
    %s2981 = scalar_lea.sflag [#allocation3], 1
    %2982 = vsyncpa %s2981, 1
    %2983 = vsyncpa [#allocation6], 1
    %s2984 = scalar_lea.sflag [#allocation6], 1
    %2985 = vsyncpa %s2984, 1
    %2986 = vsyncpa [#allocation9], 1
    %2987 = vsyncpa [#allocation12], 1
    %2988 = vsyncpa [#allocation15], 1
    %2989 = vsyncpa [#allocation18], 1
    %2990 = vsyncpa [#allocation21], 1
    %2991 = vsyncpa [#allocation4], 1
    %s2992 = scalar_lea.sflag [#allocation4], 1
    %2993 = vsyncpa %s2992, 1

</llo_original>
